<compile_context>
chip_gen: v7x
topology: tpu7x:2x2x1
jax: 0.10.0
libtpu: 0.0.40
codegen_flags: <defaults>
</compile_context>

<pallas_src>
import functools
import numpy as np
import jax
import jax.numpy as jnp
from jax.experimental import pallas as pl
from jax.experimental.pallas import tpu as pltpu


def _dft_twiddles(n):
    """cos/sin DFT factors, float64, index product reduced mod n for accuracy."""
    k = np.arange(n)
    prod = np.outer(k, k) % n
    theta = 2.0 * np.pi * prod.astype(np.float64) / n
    return np.cos(theta), np.sin(theta)


def _choose_batch_tile(B, W, lane_target=128):
    """Pick how many images to pack into the lane axis per grid step."""
    if W % 128 == 0:
        return 1                                  # already lane-dense per image
    if lane_target % W == 0:
        return max(1, min(B, lane_target // W))   # fill a full vreg of lanes
    return B                                      # full-batch block (always legal)


def _mask_layer_kernel(xp_ref, mp_ref, ch_ref, sh_ref, chps_ref, chms_ref,
                       bc_ref, bp_ref, bm_ref, mk_ref, zf_ref, abs_ref,
                       *, inv_hw):
    x = xp_ref[...]          # (H, L) packed real images, L = BT*W
    m = mp_ref[...]          # (H, L) packed k-space masks
    Ch = ch_ref[...]         # (H, H) cos twiddles (column DFT)
    Sh = sh_ref[...]         # (H, H) sin twiddles
    ChpSh = chps_ref[...]    # Ch + Sh   (Gauss combo)
    ChmSh = chms_ref[...]    # Ch - Sh   (Gauss combo)
    Bc = bc_ref[...]         # (L, L) kron(I_BT, Cw)
    Bp = bp_ref[...]         # (L, L) kron(I_BT, Cw + Sw)
    Bm = bm_ref[...]         # (L, L) kron(I_BT, Cw - Sw)

    dot = lambda a, b: jnp.dot(a, b, preferred_element_type=jnp.float32)

    # ---- forward column (H) DFT: u = (Ch - i Sh) @ x, x real -> 2 matmuls ----
    u_re = dot(Ch, x)
    u_im = -dot(Sh, x)

    # ---- forward row (W) DFT: f = u @ (Bc - i Bs), Gauss 3-mult ----
    k1 = dot(u_re + u_im, Bc)
    f_re = k1 - dot(u_im, Bm)
    f_im = k1 - dot(u_re, Bp)

    # ---- undersample (same mask on real & imag channels) ----
    mk_re = f_re * m
    mk_im = f_im * m
    mk_ref[0] = mk_re
    mk_ref[1] = mk_im

    # ---- inverse column (H) DFT: q = (Ch + i Sh) @ mk, Gauss 3-mult ----
    g1 = dot(Ch, mk_re + mk_im)
    q_re = g1 - dot(ChpSh, mk_im)
    q_im = g1 - dot(ChmSh, mk_re)

    # ---- inverse row (W) DFT: z = q @ (Bc + i Bs) / (H*W), Gauss 3-mult ----
    h1 = dot(q_re + q_im, Bc)
    z_re = (h1 - dot(q_im, Bp)) * inv_hw
    z_im = (h1 - dot(q_re, Bm)) * inv_hw
    zf_ref[0] = z_re
    zf_ref[1] = z_im

    # ---- complex magnitude ----
    abs_ref[0] = jnp.sqrt(z_re * z_re + z_im * z_im)


def hand_tailed_mask_forward(x, masks_pool, idx, *, lane_target=128):
    """Pallas implementation of Hand_Tailed_Mask_Layer.forward.

    x          : [B, 1, H, W] float32
    masks_pool : [N, 1, H, W] float32  (stands in for the .mat mask pool)
    idx        : [B] int32             (mask indices for this batch)
    """
    B, C, H, W = x.shape
    assert C == 1
    x = x.astype(jnp.float32)
    # batch_trajectories is itself a module output, so the gather must be
    # materialized anyway; no benefit from an in-kernel scalar-prefetch gather.
    batch_trajectories = masks_pool[idx].astype(jnp.float32)      # (B, 1, H, W)

    BT = _choose_batch_tile(B, W, lane_target)
    B_pad = -(-B // BT) * BT
    grid = B_pad // BT
    L = BT * W

    if B_pad != B:
        pad = ((0, B_pad - B), (0, 0), (0, 0), (0, 0))
        x_p4 = jnp.pad(x, pad)
        m_p4 = jnp.pad(batch_trajectories, pad)
    else:
        x_p4, m_p4 = x, batch_trajectories

    # Pack the batch into the lane axis: (B_pad,1,H,W) -> (H, B_pad*W)
    x_packed = jnp.transpose(x_p4[:, 0], (1, 0, 2)).reshape(H, B_pad * W)
    m_packed = jnp.transpose(m_p4[:, 0], (1, 0, 2)).reshape(H, B_pad * W)

    # Twiddle constants (host-side, float64 -> f32). W-side factors are expanded
    # block-diagonally so BT packed images share one MXU matmul; when BT == 1
    # this degenerates to the plain (W, W) matrices.
    cos_h, sin_h = _dft_twiddles(H)
    cos_w, sin_w = _dft_twiddles(W)
    eye_bt = np.eye(BT, dtype=np.float64)
    Ch = jnp.asarray(cos_h, dtype=jnp.float32)
    Sh = jnp.asarray(sin_h, dtype=jnp.float32)
    ChpSh = jnp.asarray(cos_h + sin_h, dtype=jnp.float32)
    ChmSh = jnp.asarray(cos_h - sin_h, dtype=jnp.float32)
    Bc = jnp.asarray(np.kron(eye_bt, cos_w), dtype=jnp.float32)
    Bp = jnp.asarray(np.kron(eye_bt, cos_w + sin_w), dtype=jnp.float32)
    Bm = jnp.asarray(np.kron(eye_bt, cos_w - sin_w), dtype=jnp.float32)

    const_hh = pl.BlockSpec((H, H), lambda b: (0, 0))
    const_ll = pl.BlockSpec((L, L), lambda b: (0, 0))
    packed_in = pl.BlockSpec((H, L), lambda b: (0, b))

    # Cost hint for XLA scheduling around the kernel.
    flops = grid * (10 * H * H * L + 12 * H * L * L)
    bytes_accessed = 4 * (7 * H * B_pad * W + 4 * H * H + 3 * L * L)
    cost = pl.CostEstimate(flops=flops, transcendentals=grid * H * L,
                           bytes_accessed=bytes_accessed)

    # Bound VMEM explicitly (matters on v7x's 64 MiB for large images).
    block_bytes = 4 * H * L
    vmem_est = 30 * block_bytes + 8 * (4 * H * H + 3 * L * L)
    vmem_limit = int(min(48 * 1024 * 1024, max(32 * 1024 * 1024, 2 * vmem_est)))

    kernel = functools.partial(_mask_layer_kernel, inv_hw=1.0 / (H * W))

    masked_k_p, zf_p, abs_p = pl.pallas_call(
        kernel,
        out_shape=(
            jax.ShapeDtypeStruct((2, H, B_pad * W), jnp.float32),  # masked_k (packed)
            jax.ShapeDtypeStruct((2, H, B_pad * W), jnp.float32),  # zero_filling (packed)
            jax.ShapeDtypeStruct((1, H, B_pad * W), jnp.float32),  # complex_abs (packed)
        ),
        grid_spec=pltpu.PrefetchScalarGridSpec(
            num_scalar_prefetch=0,
            grid=(grid,),
            in_specs=[
                packed_in, packed_in,                 # x, mask (lane-packed)
                const_hh, const_hh, const_hh, const_hh,   # Ch, Sh, Ch+Sh, Ch-Sh
                const_ll, const_ll, const_ll,             # Bc, Bc+Bs, Bc-Bs
            ],
            out_specs=[
                pl.BlockSpec((2, H, L), lambda b: (0, 0, b)),
                pl.BlockSpec((2, H, L), lambda b: (0, 0, b)),
                pl.BlockSpec((1, H, L), lambda b: (0, 0, b)),
            ],
        ),
        compiler_params=pltpu.CompilerParams(
            dimension_semantics=("parallel",),
            vmem_limit_bytes=vmem_limit,
        ),
        cost_estimate=cost,
    )(x_packed, m_packed, Ch, Sh, ChpSh, ChmSh, Bc, Bp, Bm)

    def unpack(arr_p):  # (c, H, B_pad*W) -> (B, c, H, W)  (layout plumbing only)
        c = arr_p.shape[0]
        a = arr_p.reshape(c, H, B_pad, W)
        return jnp.transpose(a, (2, 0, 1, 3))[:B]

    return {
        'masked_k': unpack(masked_k_p),
        'complex_abs': unpack(abs_p),
        'zero_filling': unpack(zf_p),
        'batch_trajectories': batch_trajectories,
    }


def _reference(x, batch_trajectories):
    """Pure-JAX reference mirroring the PyTorch forward (for verification)."""
    xc = x[:, 0].astype(jnp.complex64)                  # [B, H, W]
    fft = jnp.fft.fft2(xc)                              # torch.rfft(.., onesided=False)
    m = batch_trajectories[:, 0]
    masked = fft * m
    uifft = jnp.fft.ifft2(masked)                       # torch.ifft normalizes by 1/HW
    masked_k = jnp.stack([masked.real, masked.imag], axis=1)
    zero_filling = jnp.stack([uifft.real, uifft.imag], axis=1)
    complex_abs = jnp.abs(uifft)[:, None]
    return masked_k, zero_filling, complex_abs


if __name__ == "__main__":
    B, C, H, W = 16, 1, 16, 16         # single-channel real images, NCHW
    N_MASKS = 20                       # synthetic mask pool (stands in for .mat files)

    key = jax.random.PRNGKey(0)
    kx, km, ki = jax.random.split(key, 3)

    x = jax.random.normal(kx, (B, C, H, W), dtype=jnp.float32)

    # Deterministic synthetic Cartesian-ish undersampling masks (binary, fftshift
    # convention baked in: low frequencies at the corners -> keep first/last rows).
    # TODO(synk): real module loads .mat masks from disk; synthesized here instead.
    masks = np.zeros((N_MASKS, 1, H, W), dtype=np.float32)
    for n in range(N_MASKS):
        masks[n, 0, ::(n % 3 + 2), :] = 1.0   # keep every k-th row
        masks[n, 0, :2, :] = 1.0              # always keep DC-adjacent rows
        masks[n, 0, -2:, :] = 1.0
    masks_pool = jnp.asarray(masks)

    # torch.randperm(N)[:B] analogue, deterministic via PRNGKey
    idx = jax.random.permutation(ki, N_MASKS)[:B]

    out = hand_tailed_mask_forward(x, masks_pool, idx)
    jax.block_until_ready(out)

    # correctness check against pure-JAX FFT reference
    ref_mk, ref_zf, ref_abs = _reference(x, out['batch_trajectories'])
    assert np.allclose(np.asarray(out['masked_k']), np.asarray(ref_mk),
                       rtol=1e-3, atol=1e-3)
    assert np.allclose(np.asarray(out['zero_filling']), np.asarray(ref_zf),
                       rtol=1e-3, atol=1e-3)
    assert np.allclose(np.asarray(out['complex_abs']), np.asarray(ref_abs),
                       rtol=1e-3, atol=1e-3)

    print("KERNEL_OK")
</pallas_src>

<mosaic_0001>
module attributes {stable_mosaic.version = 11 : i64} {
  func.func @_mask_layer_kernel(%arg0: i32, %arg1: memref<16x128xf32, #tpu.memory_space<vmem>>, %arg2: memref<16x128xf32, #tpu.memory_space<vmem>>, %arg3: memref<16x16xf32, #tpu.memory_space<vmem>>, %arg4: memref<16x16xf32, #tpu.memory_space<vmem>>, %arg5: memref<16x16xf32, #tpu.memory_space<vmem>>, %arg6: memref<16x16xf32, #tpu.memory_space<vmem>>, %arg7: memref<128x128xf32, #tpu.memory_space<vmem>>, %arg8: memref<128x128xf32, #tpu.memory_space<vmem>>, %arg9: memref<128x128xf32, #tpu.memory_space<vmem>>, %arg10: memref<2x16x128xf32, #tpu.memory_space<vmem>>, %arg11: memref<2x16x128xf32, #tpu.memory_space<vmem>>, %arg12: memref<1x16x128xf32, #tpu.memory_space<vmem>>) attributes {dimension_semantics = [#tpu.dimension_semantics<parallel>], iteration_bounds = array<i64: 2>, scalar_prefetch = 0 : i64, scratch_operands = 0 : i64, tpu.core_type = #tpu.core_type<tc>, window_params = [{transform_indices = @transform_0, window_bounds = array<i64: 16, 128>}, {transform_indices = @transform_1, window_bounds = array<i64: 16, 128>}, {pipeline_mode = #tpu.pipeline_mode<synchronous>, transform_indices = @transform_2, window_bounds = array<i64: 16, 16>}, {pipeline_mode = #tpu.pipeline_mode<synchronous>, transform_indices = @transform_3, window_bounds = array<i64: 16, 16>}, {pipeline_mode = #tpu.pipeline_mode<synchronous>, transform_indices = @transform_4, window_bounds = array<i64: 16, 16>}, {pipeline_mode = #tpu.pipeline_mode<synchronous>, transform_indices = @transform_5, window_bounds = array<i64: 16, 16>}, {pipeline_mode = #tpu.pipeline_mode<synchronous>, transform_indices = @transform_6, window_bounds = array<i64: 128, 128>}, {pipeline_mode = #tpu.pipeline_mode<synchronous>, transform_indices = @transform_7, window_bounds = array<i64: 128, 128>}, {pipeline_mode = #tpu.pipeline_mode<synchronous>, transform_indices = @transform_8, window_bounds = array<i64: 128, 128>}, {transform_indices = @transform_9, window_bounds = array<i64: 2, 16, 128>}, {transform_indices = @transform_10, window_bounds = array<i64: 2, 16, 128>}, {transform_indices = @transform_11, window_bounds = array<i64: 1, 16, 128>}]} {
    %c0 = arith.constant 0 : index
    %c0_0 = arith.constant 0 : index
    %0 = vector.load %arg1[%c0, %c0_0] : memref<16x128xf32, #tpu.memory_space<vmem>>, vector<16x128xf32>
    %c0_1 = arith.constant 0 : index
    %c0_2 = arith.constant 0 : index
    %1 = vector.load %arg2[%c0_1, %c0_2] : memref<16x128xf32, #tpu.memory_space<vmem>>, vector<16x128xf32>
    %c0_3 = arith.constant 0 : index
    %c0_4 = arith.constant 0 : index
    %2 = vector.load %arg3[%c0_3, %c0_4] : memref<16x16xf32, #tpu.memory_space<vmem>>, vector<16x16xf32>
    %c0_5 = arith.constant 0 : index
    %c0_6 = arith.constant 0 : index
    %3 = vector.load %arg4[%c0_5, %c0_6] : memref<16x16xf32, #tpu.memory_space<vmem>>, vector<16x16xf32>
    %c0_7 = arith.constant 0 : index
    %c0_8 = arith.constant 0 : index
    %4 = vector.load %arg5[%c0_7, %c0_8] : memref<16x16xf32, #tpu.memory_space<vmem>>, vector<16x16xf32>
    %c0_9 = arith.constant 0 : index
    %c0_10 = arith.constant 0 : index
    %5 = vector.load %arg6[%c0_9, %c0_10] : memref<16x16xf32, #tpu.memory_space<vmem>>, vector<16x16xf32>
    %c0_11 = arith.constant 0 : index
    %c0_12 = arith.constant 0 : index
    %6 = vector.load %arg7[%c0_11, %c0_12] : memref<128x128xf32, #tpu.memory_space<vmem>>, vector<128x128xf32>
    %c0_13 = arith.constant 0 : index
    %c0_14 = arith.constant 0 : index
    %7 = vector.load %arg8[%c0_13, %c0_14] : memref<128x128xf32, #tpu.memory_space<vmem>>, vector<128x128xf32>
    %c0_15 = arith.constant 0 : index
    %c0_16 = arith.constant 0 : index
    %8 = vector.load %arg9[%c0_15, %c0_16] : memref<128x128xf32, #tpu.memory_space<vmem>>, vector<128x128xf32>
    %cst = arith.constant dense<0.000000e+00> : vector<16x128xf32>
    %9 = tpu.matmul %2, %0, %cst {dimension_numbers = #tpu.dot_dimension_numbers<[1], [0], [0], [1], [0, 0, 1, 1], [], []>} : vector<16x16xf32>, vector<16x128xf32>, vector<16x128xf32> -> vector<16x128xf32>
    %cst_17 = arith.constant dense<0.000000e+00> : vector<16x128xf32>
    %10 = tpu.matmul %3, %0, %cst_17 {dimension_numbers = #tpu.dot_dimension_numbers<[1], [0], [0], [1], [0, 0, 1, 1], [], []>} : vector<16x16xf32>, vector<16x128xf32>, vector<16x128xf32> -> vector<16x128xf32>
    %cst_18 = arith.constant 0.000000e+00 : f32
    %11 = vector.broadcast %cst_18 : f32 to vector<16x128xf32>
    %12 = arith.subf %11, %10 : vector<16x128xf32>
    %13 = arith.addf %9, %12 : vector<16x128xf32>
    %cst_19 = arith.constant dense<0.000000e+00> : vector<16x128xf32>
    %14 = tpu.matmul %13, %6, %cst_19 {dimension_numbers = #tpu.dot_dimension_numbers<[1], [0], [0], [1], [0, 0, 1, 1], [], []>} : vector<16x128xf32>, vector<128x128xf32>, vector<16x128xf32> -> vector<16x128xf32>
    %cst_20 = arith.constant dense<0.000000e+00> : vector<16x128xf32>
    %15 = tpu.matmul %12, %8, %cst_20 {dimension_numbers = #tpu.dot_dimension_numbers<[1], [0], [0], [1], [0, 0, 1, 1], [], []>} : vector<16x128xf32>, vector<128x128xf32>, vector<16x128xf32> -> vector<16x128xf32>
    %16 = arith.subf %14, %15 : vector<16x128xf32>
    %cst_21 = arith.constant dense<0.000000e+00> : vector<16x128xf32>
    %17 = tpu.matmul %9, %7, %cst_21 {dimension_numbers = #tpu.dot_dimension_numbers<[1], [0], [0], [1], [0, 0, 1, 1], [], []>} : vector<16x128xf32>, vector<128x128xf32>, vector<16x128xf32> -> vector<16x128xf32>
    %18 = arith.subf %14, %17 : vector<16x128xf32>
    %19 = arith.mulf %16, %1 : vector<16x128xf32>
    %20 = arith.mulf %18, %1 : vector<16x128xf32>
    %c0_22 = arith.constant 0 : index
    %c0_23 = arith.constant 0 : index
    %c0_24 = arith.constant 0 : index
    %21 = vector.load %arg10[%c0_22, %c0_23, %c0_24] : memref<2x16x128xf32, #tpu.memory_space<vmem>>, vector<1x16x128xf32>
    %22 = vector.shape_cast %21 : vector<1x16x128xf32> to vector<16x128xf32>
    %23 = vector.shape_cast %19 : vector<16x128xf32> to vector<1x16x128xf32>
    tpu.vector_store %arg10[%c0_22, %c0_23, %c0_24], %23 {strides = array<i32>} : memref<2x16x128xf32, #tpu.memory_space<vmem>>, vector<1x16x128xf32>,
    %c1 = arith.constant 1 : index
    %c0_25 = arith.constant 0 : index
    %c0_26 = arith.constant 0 : index
    %24 = vector.load %arg10[%c1, %c0_25, %c0_26] : memref<2x16x128xf32, #tpu.memory_space<vmem>>, vector<1x16x128xf32>
    %25 = vector.shape_cast %24 : vector<1x16x128xf32> to vector<16x128xf32>
    %26 = vector.shape_cast %20 : vector<16x128xf32> to vector<1x16x128xf32>
    tpu.vector_store %arg10[%c1, %c0_25, %c0_26], %26 {strides = array<i32>} : memref<2x16x128xf32, #tpu.memory_space<vmem>>, vector<1x16x128xf32>,
    %27 = arith.addf %19, %20 : vector<16x128xf32>
    %cst_27 = arith.constant dense<0.000000e+00> : vector<16x128xf32>
    %28 = tpu.matmul %2, %27, %cst_27 {dimension_numbers = #tpu.dot_dimension_numbers<[1], [0], [0], [1], [0, 0, 1, 1], [], []>} : vector<16x16xf32>, vector<16x128xf32>, vector<16x128xf32> -> vector<16x128xf32>
    %cst_28 = arith.constant dense<0.000000e+00> : vector<16x128xf32>
    %29 = tpu.matmul %4, %20, %cst_28 {dimension_numbers = #tpu.dot_dimension_numbers<[1], [0], [0], [1], [0, 0, 1, 1], [], []>} : vector<16x16xf32>, vector<16x128xf32>, vector<16x128xf32> -> vector<16x128xf32>
    %30 = arith.subf %28, %29 : vector<16x128xf32>
    %cst_29 = arith.constant dense<0.000000e+00> : vector<16x128xf32>
    %31 = tpu.matmul %5, %19, %cst_29 {dimension_numbers = #tpu.dot_dimension_numbers<[1], [0], [0], [1], [0, 0, 1, 1], [], []>} : vector<16x16xf32>, vector<16x128xf32>, vector<16x128xf32> -> vector<16x128xf32>
    %32 = arith.subf %28, %31 : vector<16x128xf32>
    %33 = arith.addf %30, %32 : vector<16x128xf32>
    %cst_30 = arith.constant dense<0.000000e+00> : vector<16x128xf32>
    %34 = tpu.matmul %33, %6, %cst_30 {dimension_numbers = #tpu.dot_dimension_numbers<[1], [0], [0], [1], [0, 0, 1, 1], [], []>} : vector<16x128xf32>, vector<128x128xf32>, vector<16x128xf32> -> vector<16x128xf32>
    %cst_31 = arith.constant dense<0.000000e+00> : vector<16x128xf32>
    %35 = tpu.matmul %32, %7, %cst_31 {dimension_numbers = #tpu.dot_dimension_numbers<[1], [0], [0], [1], [0, 0, 1, 1], [], []>} : vector<16x128xf32>, vector<128x128xf32>, vector<16x128xf32> -> vector<16x128xf32>
    %36 = arith.subf %34, %35 : vector<16x128xf32>
    %cst_32 = arith.constant 3.906250e-03 : f32
    %37 = vector.broadcast %cst_32 : f32 to vector<16x128xf32>
    %38 = arith.mulf %36, %37 : vector<16x128xf32>
    %cst_33 = arith.constant dense<0.000000e+00> : vector<16x128xf32>
    %39 = tpu.matmul %30, %8, %cst_33 {dimension_numbers = #tpu.dot_dimension_numbers<[1], [0], [0], [1], [0, 0, 1, 1], [], []>} : vector<16x128xf32>, vector<128x128xf32>, vector<16x128xf32> -> vector<16x128xf32>
    %40 = arith.subf %34, %39 : vector<16x128xf32>
    %cst_34 = arith.constant 3.906250e-03 : f32
    %41 = vector.broadcast %cst_34 : f32 to vector<16x128xf32>
    %42 = arith.mulf %40, %41 : vector<16x128xf32>
    %c0_35 = arith.constant 0 : index
    %c0_36 = arith.constant 0 : index
    %c0_37 = arith.constant 0 : index
    %43 = vector.load %arg11[%c0_35, %c0_36, %c0_37] : memref<2x16x128xf32, #tpu.memory_space<vmem>>, vector<1x16x128xf32>
    %44 = vector.shape_cast %43 : vector<1x16x128xf32> to vector<16x128xf32>
    %45 = vector.shape_cast %38 : vector<16x128xf32> to vector<1x16x128xf32>
    tpu.vector_store %arg11[%c0_35, %c0_36, %c0_37], %45 {strides = array<i32>} : memref<2x16x128xf32, #tpu.memory_space<vmem>>, vector<1x16x128xf32>,
    %c1_38 = arith.constant 1 : index
    %c0_39 = arith.constant 0 : index
    %c0_40 = arith.constant 0 : index
    %46 = vector.load %arg11[%c1_38, %c0_39, %c0_40] : memref<2x16x128xf32, #tpu.memory_space<vmem>>, vector<1x16x128xf32>
    %47 = vector.shape_cast %46 : vector<1x16x128xf32> to vector<16x128xf32>
    %48 = vector.shape_cast %42 : vector<16x128xf32> to vector<1x16x128xf32>
    tpu.vector_store %arg11[%c1_38, %c0_39, %c0_40], %48 {strides = array<i32>} : memref<2x16x128xf32, #tpu.memory_space<vmem>>, vector<1x16x128xf32>,
    %49 = arith.mulf %38, %38 : vector<16x128xf32>
    %50 = arith.mulf %42, %42 : vector<16x128xf32>
    %51 = arith.addf %49, %50 : vector<16x128xf32>
    %52 = math.sqrt %51 : vector<16x128xf32>
    %c0_41 = arith.constant 0 : index
    %c0_42 = arith.constant 0 : index
    %c0_43 = arith.constant 0 : index
    %53 = vector.load %arg12[%c0_41, %c0_42, %c0_43] : memref<1x16x128xf32, #tpu.memory_space<vmem>>, vector<1x16x128xf32>
    %54 = vector.shape_cast %53 : vector<1x16x128xf32> to vector<16x128xf32>
    %55 = vector.shape_cast %52 : vector<16x128xf32> to vector<1x16x128xf32>
    tpu.vector_store %arg12[%c0_41, %c0_42, %c0_43], %55 {strides = array<i32>} : memref<1x16x128xf32, #tpu.memory_space<vmem>>, vector<1x16x128xf32>,
    return
  }
  func.func @transform_0(%arg0: i32) -> (i32, i32) {
    %c0_i32 = arith.constant 0 : i32
    %c0_i32_0 = arith.constant 0 : i32
    return %c0_i32, %arg0 : i32, i32
  }
  func.func @transform_1(%arg0: i32) -> (i32, i32) {
    %c0_i32 = arith.constant 0 : i32
    %c0_i32_0 = arith.constant 0 : i32
    return %c0_i32, %arg0 : i32, i32
  }
  func.func @transform_2(%arg0: i32) -> (i32, i32) {
    %c0_i32 = arith.constant 0 : i32
    %c0_i32_0 = arith.constant 0 : i32
    %c0_i32_1 = arith.constant 0 : i32
    return %c0_i32, %c0_i32_0 : i32, i32
  }
  func.func @transform_3(%arg0: i32) -> (i32, i32) {
    %c0_i32 = arith.constant 0 : i32
    %c0_i32_0 = arith.constant 0 : i32
    %c0_i32_1 = arith.constant 0 : i32
    return %c0_i32, %c0_i32_0 : i32, i32
  }
  func.func @transform_4(%arg0: i32) -> (i32, i32) {
    %c0_i32 = arith.constant 0 : i32
    %c0_i32_0 = arith.constant 0 : i32
    %c0_i32_1 = arith.constant 0 : i32
    return %c0_i32, %c0_i32_0 : i32, i32
  }
  func.func @transform_5(%arg0: i32) -> (i32, i32) {
    %c0_i32 = arith.constant 0 : i32
    %c0_i32_0 = arith.constant 0 : i32
    %c0_i32_1 = arith.constant 0 : i32
    return %c0_i32, %c0_i32_0 : i32, i32
  }
  func.func @transform_6(%arg0: i32) -> (i32, i32) {
    %c0_i32 = arith.constant 0 : i32
    %c0_i32_0 = arith.constant 0 : i32
    %c0_i32_1 = arith.constant 0 : i32
    return %c0_i32, %c0_i32_0 : i32, i32
  }
  func.func @transform_7(%arg0: i32) -> (i32, i32) {
    %c0_i32 = arith.constant 0 : i32
    %c0_i32_0 = arith.constant 0 : i32
    %c0_i32_1 = arith.constant 0 : i32
    return %c0_i32, %c0_i32_0 : i32, i32
  }
  func.func @transform_8(%arg0: i32) -> (i32, i32) {
    %c0_i32 = arith.constant 0 : i32
    %c0_i32_0 = arith.constant 0 : i32
    %c0_i32_1 = arith.constant 0 : i32
    return %c0_i32, %c0_i32_0 : i32, i32
  }
  func.func @transform_9(%arg0: i32) -> (i32, i32, i32) {
    %c0_i32 = arith.constant 0 : i32
    %c0_i32_0 = arith.constant 0 : i32
    %c0_i32_1 = arith.constant 0 : i32
    return %c0_i32, %c0_i32_0, %arg0 : i32, i32, i32
  }
  func.func @transform_10(%arg0: i32) -> (i32, i32, i32) {
    %c0_i32 = arith.constant 0 : i32
    %c0_i32_0 = arith.constant 0 : i32
    %c0_i32_1 = arith.constant 0 : i32
    return %c0_i32, %c0_i32_0, %arg0 : i32, i32, i32
  }
  func.func @transform_11(%arg0: i32) -> (i32, i32, i32) {
    %c0_i32 = arith.constant 0 : i32
    %c0_i32_0 = arith.constant 0 : i32
    %c0_i32_1 = arith.constant 0 : i32
    return %c0_i32, %c0_i32_0, %arg0 : i32, i32, i32
  }
}

</mosaic_0001>

<llo_original>
// kernel: tpu_custom_call.1
$region0: #{tpu_custom_call.1}
  #allocation0 [shape = 'u32[]', space=smem, size = 0x4, offset = 0x4, fixed_abs, tag = 'smem constant byte address 0x4 - core index']
  #allocation1 [shape = 'u32[144,128]{1,0:T(1,128)}', space=vmem, size = 0x12000, scoped, tag = 'internal scratch']
  %s0 = inlined_call_operand.hbm [shape: f32[16,256], index: 0, kind: input, shape index: {}]
  %s1 = inlined_call_operand.hbm [shape: f32[16,256], index: 1, kind: input, shape index: {}]
  %s2 = inlined_call_operand.hbm [shape: f32[16,16], index: 2, kind: input, shape index: {}]
  %s3 = inlined_call_operand.hbm [shape: f32[16,16], index: 3, kind: input, shape index: {}]
  %s4 = inlined_call_operand.hbm [shape: f32[16,16], index: 4, kind: input, shape index: {}]
  %s5 = inlined_call_operand.vmem [shape: f32[16,16], index: 5, kind: input, shape index: {}]
  %s6 = inlined_call_operand.hbm [shape: f32[128,128], index: 6, kind: input, shape index: {}]
  %s7 = inlined_call_operand.hbm [shape: f32[128,128], index: 7, kind: input, shape index: {}]
  %s8 = inlined_call_operand.hbm [shape: f32[128,128], index: 8, kind: input, shape index: {}]
  %s9 = inlined_call_operand.hbm [shape: f32[2,16,256], index: 9, kind: output, shape index: {0}]
  %s10 = inlined_call_operand.hbm [shape: f32[2,16,256], index: 10, kind: output, shape index: {1}]
  %s11 = inlined_call_operand.hbm [shape: f32[1,16,256], index: 11, kind: output, shape index: {2}]
  %12 = xla_tuple %s9, %s10, %s11
  %s13 = sld [smem:[#allocation0]]
  $region117: #{tpu_custom_call.1} parent=0
    _
  %s15 = ssub.s32 1, %s13
  %s16 = scalar_select 0, %s15, %s13
  $region1: #{tpu_custom_call.1} parent=0
    #allocation2 [shape = 'u8[16384]{0}', space=vmem, size = 0x4000, scoped, tag = 'input window, operand 0']
    #allocation3 [shape = 's32[2]{0}', space=sflag, size = 0x8, scoped, tag = 'scoped memory for tpu_custom_call.1']
    #allocation4 [shape = 's32[2]{0}', space=sflag, size = 0x8, scoped, tag = 'scoped memory for tpu_custom_call.1']
    #allocation5 [shape = 'u8[16384]{0}', space=vmem, size = 0x4000, scoped, tag = 'input window, operand 1']
    #allocation6 [shape = 's32[2]{0}', space=sflag, size = 0x8, scoped, tag = 'scoped memory for tpu_custom_call.1']
    #allocation7 [shape = 'u8[8192]{0}', space=vmem, size = 0x2000, scoped, tag = 'input window, operand 2, single buffered']
    #allocation8 [shape = 'u8[8192]{0}', space=vmem, size = 0x2000, scoped, tag = 'input window, operand 3, single buffered']
    #allocation9 [shape = 's32[1]{0}', space=sflag, size = 0x4, scoped, tag = 'scoped memory for tpu_custom_call.1']
    #allocation10 [shape = 'u8[8192]{0}', space=vmem, size = 0x2000, scoped, tag = 'input window, operand 4, single buffered']
    #allocation11 [shape = 'u8[65536]{0}', space=vmem, size = 0x10000, scoped, tag = 'input window, operand 6, single buffered']
    #allocation12 [shape = 's32[1]{0}', space=sflag, size = 0x4, scoped, tag = 'scoped memory for tpu_custom_call.1']
    #allocation13 [shape = 'u8[65536]{0}', space=vmem, size = 0x10000, scoped, tag = 'input window, operand 7, single buffered']
    #allocation14 [shape = 'u8[65536]{0}', space=vmem, size = 0x10000, scoped, tag = 'input window, operand 8, single buffered']
    #allocation15 [shape = 's32[1]{0}', space=sflag, size = 0x4, scoped, tag = 'scoped memory for tpu_custom_call.1']
    #allocation16 [shape = 'u8[32768]{0}', space=vmem, size = 0x8000, scoped, tag = 'output window, operand 0']
    #allocation17 [shape = 'u8[32768]{0}', space=vmem, size = 0x8000, scoped, tag = 'output window, operand 1']
    #allocation18 [shape = 's32[2]{0}', space=sflag, size = 0x8, scoped, tag = 'scoped memory for tpu_custom_call.1']
    #allocation19 [shape = 'u8[16384]{0}', space=vmem, size = 0x4000, scoped, tag = 'output window, operand 2']
    %17 = vsyncpa [#allocation3], 0
    %s18 = scalar_lea.sflag [#allocation3], 1
    %19 = vsyncpa %s18, 0
    %20 = vsyncpa [#allocation6], 0
    %s21 = scalar_lea.sflag [#allocation6], 1
    %22 = vsyncpa %s21, 0
    %23 = vsyncpa [#allocation9], 0
    %24 = vsyncpa [#allocation12], 0
    %25 = vsyncpa [#allocation15], 0
    %26 = vsyncpa [#allocation4], 0
    %s27 = scalar_lea.sflag [#allocation4], 1
    %28 = vsyncpa %s27, 0
    %29 = vsyncpa [#allocation18], 0
    %s30 = scalar_lea.sflag [#allocation18], 1
    %31 = vsyncpa %s30, 0
    loop: start=0, step=1, limit=4
    $region2: #{tpu_custom_call.1} parent=1 // loop_pre_header
      _
    $region3: #{tpu_custom_call.1} parent=1 // loop_header
      %s33 = sphi 0, %s37
      %p34 = scmp.ge.s32.totalorder %s33, 4
      %s43 = sphi 0, %s45
      %s46 = sphi 0, %s43
      %s47 = sphi 0, %s46
      %s63 = sphi 0, %s47
      %s69 = sphi 0, %s71
      %s72 = sphi 0, %s69
      %s73 = sphi 0, %s72
      %s89 = sphi 0, %s73
      %s93 = sphi 0, %s93
      %s95 = sphi 0, %s93
      %s96 = sphi 0, %s95
      %s110 = sphi 0, %s96
      %s114 = sphi 0, %s114
      %s116 = sphi 0, %s114
      %s117 = sphi 0, %s116
      %s131 = sphi 0, %s117
      %s135 = sphi 0, %s135
      %s137 = sphi 0, %s135
      %s138 = sphi 0, %s137
      %s152 = sphi 0, %s138
      %s156 = sphi 0, %s156
      %s158 = sphi 0, %s156
      %s159 = sphi 0, %s158
      %s173 = sphi 0, %s159
      %s177 = sphi 0, %s177
      %s179 = sphi 0, %s177
      %s180 = sphi 0, %s179
      %s194 = sphi 0, %s180
      %s198 = sphi 0, %s198
      %s200 = sphi 0, %s198
      %s201 = sphi 0, %s200
      %s215 = sphi 0, %s201
      %s219 = sphi 0, %s219
      %s221 = sphi 0, %s219
      %s222 = sphi 0, %s221
      %s236 = sphi 0, %s222
      %s242 = sphi 0, %s244
      %s245 = sphi 0, %s242
      %s246 = sphi 0, %s245
      %s262 = sphi 0, %s246
      %s268 = sphi 0, %s270
      %s271 = sphi 0, %s268
      %s272 = sphi 0, %s271
      %s288 = sphi 0, %s272
      %s294 = sphi 0, %s296
      %s297 = sphi 0, %s294
      %s298 = sphi 0, %s297
      %s314 = sphi 0, %s298
    $region4: #{tpu_custom_call.1} parent=1 // loop_header_branch
      %36 = sbr.rel (%p34) target = $region8
    $region5: #{tpu_custom_call.1} parent=1 // loop_body
      %s38 = ssub.s32 %s33, 1
      %s39 = ssub.s32 %s33, 2
      %s40 = sadd.s32 %s33, 1
      %s41 = ssub.s32 %s33, %s40
      %p42 = scmp.eq.s32.totalorder %s41, 0
      %s44 = sadd.s32 %s43, 1
      %s45 = scalar_select %p42, %s43, %s44
      %p48 = pneg %p42
      %p49 = scmp.eq.s32.totalorder %s33, 1
      %p50 = por %p48, %p49
      %p51 = scmp.ne.s32.totalorder %s43, %s46
      %p52 = scmp.eq.s32.totalorder %s33, 0
      %p53 = por %p51, %p52
      %p54 = scmp.ne.s32.totalorder %s43, %s46
      %p55 = scmp.eq.s32.totalorder %s38, 1
      %p56 = por %p54, %p55
      %p57 = scmp.ne.s32.totalorder %s46, %s47
      %p58 = scmp.eq.s32.totalorder %s38, 0
      %p59 = por %p57, %p58
      %p60 = scmp.ne.s32.totalorder %s46, %s47
      %p61 = scmp.eq.s32.totalorder %s39, 1
      %p62 = por %p60, %p61
      %p64 = scmp.ne.s32.totalorder %s47, %s63
      %p65 = scmp.eq.s32.totalorder %s39, 0
      %p66 = por %p64, %p65
      %s67 = ssub.s32 %s33, %s40
      %p68 = scmp.eq.s32.totalorder %s67, 0
      %s70 = sadd.s32 %s69, 1
      %s71 = scalar_select %p68, %s69, %s70
      %p74 = pneg %p68
      %p75 = scmp.eq.s32.totalorder %s33, 1
      %p76 = por %p74, %p75
      %p77 = scmp.ne.s32.totalorder %s69, %s72
      %p78 = scmp.eq.s32.totalorder %s33, 0
      %p79 = por %p77, %p78
      %p80 = scmp.ne.s32.totalorder %s69, %s72
      %p81 = scmp.eq.s32.totalorder %s38, 1
      %p82 = por %p80, %p81
      %p83 = scmp.ne.s32.totalorder %s72, %s73
      %p84 = scmp.eq.s32.totalorder %s38, 0
      %p85 = por %p83, %p84
      %p86 = scmp.ne.s32.totalorder %s72, %s73
      %p87 = scmp.eq.s32.totalorder %s39, 1
      %p88 = por %p86, %p87
      %p90 = scmp.ne.s32.totalorder %s73, %s89
      %p91 = scmp.eq.s32.totalorder %s39, 0
      %p92 = por %p90, %p91
      %s94 = sadd.s32 %s93, 1
      %p97 = scmp.eq.s32.totalorder %s33, 1
      %p98 = scmp.ne.s32.totalorder %s93, %s95
      %p99 = scmp.eq.s32.totalorder %s33, 0
      %p100 = por %p98, %p99
      %p101 = scmp.ne.s32.totalorder %s93, %s95
      %p102 = scmp.eq.s32.totalorder %s38, 1
      %p103 = por %p101, %p102
      %p104 = scmp.ne.s32.totalorder %s95, %s96
      %p105 = scmp.eq.s32.totalorder %s38, 0
      %p106 = por %p104, %p105
      %p107 = scmp.ne.s32.totalorder %s95, %s96
      %p108 = scmp.eq.s32.totalorder %s39, 1
      %p109 = por %p107, %p108
      %p111 = scmp.ne.s32.totalorder %s96, %s110
      %p112 = scmp.eq.s32.totalorder %s39, 0
      %p113 = por %p111, %p112
      %s115 = sadd.s32 %s114, 1
      %p118 = scmp.eq.s32.totalorder %s33, 1
      %p119 = scmp.ne.s32.totalorder %s114, %s116
      %p120 = scmp.eq.s32.totalorder %s33, 0
      %p121 = por %p119, %p120
      %p122 = scmp.ne.s32.totalorder %s114, %s116
      %p123 = scmp.eq.s32.totalorder %s38, 1
      %p124 = por %p122, %p123
      %p125 = scmp.ne.s32.totalorder %s116, %s117
      %p126 = scmp.eq.s32.totalorder %s38, 0
      %p127 = por %p125, %p126
      %p128 = scmp.ne.s32.totalorder %s116, %s117
      %p129 = scmp.eq.s32.totalorder %s39, 1
      %p130 = por %p128, %p129
      %p132 = scmp.ne.s32.totalorder %s117, %s131
      %p133 = scmp.eq.s32.totalorder %s39, 0
      %p134 = por %p132, %p133
      %s136 = sadd.s32 %s135, 1
      %p139 = scmp.eq.s32.totalorder %s33, 1
      %p140 = scmp.ne.s32.totalorder %s135, %s137
      %p141 = scmp.eq.s32.totalorder %s33, 0
      %p142 = por %p140, %p141
      %p143 = scmp.ne.s32.totalorder %s135, %s137
      %p144 = scmp.eq.s32.totalorder %s38, 1
      %p145 = por %p143, %p144
      %p146 = scmp.ne.s32.totalorder %s137, %s138
      %p147 = scmp.eq.s32.totalorder %s38, 0
      %p148 = por %p146, %p147
      %p149 = scmp.ne.s32.totalorder %s137, %s138
      %p150 = scmp.eq.s32.totalorder %s39, 1
      %p151 = por %p149, %p150
      %p153 = scmp.ne.s32.totalorder %s138, %s152
      %p154 = scmp.eq.s32.totalorder %s39, 0
      %p155 = por %p153, %p154
      %s157 = sadd.s32 %s156, 1
      %p160 = scmp.eq.s32.totalorder %s33, 1
      %p161 = scmp.ne.s32.totalorder %s156, %s158
      %p162 = scmp.eq.s32.totalorder %s33, 0
      %p163 = por %p161, %p162
      %p164 = scmp.ne.s32.totalorder %s156, %s158
      %p165 = scmp.eq.s32.totalorder %s38, 1
      %p166 = por %p164, %p165
      %p167 = scmp.ne.s32.totalorder %s158, %s159
      %p168 = scmp.eq.s32.totalorder %s38, 0
      %p169 = por %p167, %p168
      %p170 = scmp.ne.s32.totalorder %s158, %s159
      %p171 = scmp.eq.s32.totalorder %s39, 1
      %p172 = por %p170, %p171
      %p174 = scmp.ne.s32.totalorder %s159, %s173
      %p175 = scmp.eq.s32.totalorder %s39, 0
      %p176 = por %p174, %p175
      %s178 = sadd.s32 %s177, 1
      %p181 = scmp.eq.s32.totalorder %s33, 1
      %p182 = scmp.ne.s32.totalorder %s177, %s179
      %p183 = scmp.eq.s32.totalorder %s33, 0
      %p184 = por %p182, %p183
      %p185 = scmp.ne.s32.totalorder %s177, %s179
      %p186 = scmp.eq.s32.totalorder %s38, 1
      %p187 = por %p185, %p186
      %p188 = scmp.ne.s32.totalorder %s179, %s180
      %p189 = scmp.eq.s32.totalorder %s38, 0
      %p190 = por %p188, %p189
      %p191 = scmp.ne.s32.totalorder %s179, %s180
      %p192 = scmp.eq.s32.totalorder %s39, 1
      %p193 = por %p191, %p192
      %p195 = scmp.ne.s32.totalorder %s180, %s194
      %p196 = scmp.eq.s32.totalorder %s39, 0
      %p197 = por %p195, %p196
      %s199 = sadd.s32 %s198, 1
      %p202 = scmp.eq.s32.totalorder %s33, 1
      %p203 = scmp.ne.s32.totalorder %s198, %s200
      %p204 = scmp.eq.s32.totalorder %s33, 0
      %p205 = por %p203, %p204
      %p206 = scmp.ne.s32.totalorder %s198, %s200
      %p207 = scmp.eq.s32.totalorder %s38, 1
      %p208 = por %p206, %p207
      %p209 = scmp.ne.s32.totalorder %s200, %s201
      %p210 = scmp.eq.s32.totalorder %s38, 0
      %p211 = por %p209, %p210
      %p212 = scmp.ne.s32.totalorder %s200, %s201
      %p213 = scmp.eq.s32.totalorder %s39, 1
      %p214 = por %p212, %p213
      %p216 = scmp.ne.s32.totalorder %s201, %s215
      %p217 = scmp.eq.s32.totalorder %s39, 0
      %p218 = por %p216, %p217
      %s220 = sadd.s32 %s219, 1
      %p223 = scmp.eq.s32.totalorder %s33, 1
      %p224 = scmp.ne.s32.totalorder %s219, %s221
      %p225 = scmp.eq.s32.totalorder %s33, 0
      %p226 = por %p224, %p225
      %p227 = scmp.ne.s32.totalorder %s219, %s221
      %p228 = scmp.eq.s32.totalorder %s38, 1
      %p229 = por %p227, %p228
      %p230 = scmp.ne.s32.totalorder %s221, %s222
      %p231 = scmp.eq.s32.totalorder %s38, 0
      %p232 = por %p230, %p231
      %p233 = scmp.ne.s32.totalorder %s221, %s222
      %p234 = scmp.eq.s32.totalorder %s39, 1
      %p235 = por %p233, %p234
      %p237 = scmp.ne.s32.totalorder %s222, %s236
      %p238 = scmp.eq.s32.totalorder %s39, 0
      %p239 = por %p237, %p238
      %s240 = ssub.s32 %s33, %s40
      %p241 = scmp.eq.s32.totalorder %s240, 0
      %s243 = sadd.s32 %s242, 1
      %s244 = scalar_select %p241, %s242, %s243
      %p247 = pneg %p241
      %p248 = scmp.eq.s32.totalorder %s33, 1
      %p249 = por %p247, %p248
      %p250 = scmp.ne.s32.totalorder %s242, %s245
      %p251 = scmp.eq.s32.totalorder %s33, 0
      %p252 = por %p250, %p251
      %p253 = scmp.ne.s32.totalorder %s242, %s245
      %p254 = scmp.eq.s32.totalorder %s38, 1
      %p255 = por %p253, %p254
      %p256 = scmp.ne.s32.totalorder %s245, %s246
      %p257 = scmp.eq.s32.totalorder %s38, 0
      %p258 = por %p256, %p257
      %p259 = scmp.ne.s32.totalorder %s245, %s246
      %p260 = scmp.eq.s32.totalorder %s39, 1
      %p261 = por %p259, %p260
      %p263 = scmp.ne.s32.totalorder %s246, %s262
      %p264 = scmp.eq.s32.totalorder %s39, 0
      %p265 = por %p263, %p264
      %s266 = ssub.s32 %s33, %s40
      %p267 = scmp.eq.s32.totalorder %s266, 0
      %s269 = sadd.s32 %s268, 1
      %s270 = scalar_select %p267, %s268, %s269
      %p273 = pneg %p267
      %p274 = scmp.eq.s32.totalorder %s33, 1
      %p275 = por %p273, %p274
      %p276 = scmp.ne.s32.totalorder %s268, %s271
      %p277 = scmp.eq.s32.totalorder %s33, 0
      %p278 = por %p276, %p277
      %p279 = scmp.ne.s32.totalorder %s268, %s271
      %p280 = scmp.eq.s32.totalorder %s38, 1
      %p281 = por %p279, %p280
      %p282 = scmp.ne.s32.totalorder %s271, %s272
      %p283 = scmp.eq.s32.totalorder %s38, 0
      %p284 = por %p282, %p283
      %p285 = scmp.ne.s32.totalorder %s271, %s272
      %p286 = scmp.eq.s32.totalorder %s39, 1
      %p287 = por %p285, %p286
      %p289 = scmp.ne.s32.totalorder %s272, %s288
      %p290 = scmp.eq.s32.totalorder %s39, 0
      %p291 = por %p289, %p290
      %s292 = ssub.s32 %s33, %s40
      %p293 = scmp.eq.s32.totalorder %s292, 0
      %s295 = sadd.s32 %s294, 1
      %s296 = scalar_select %p293, %s294, %s295
      %p299 = pneg %p293
      %p300 = scmp.eq.s32.totalorder %s33, 1
      %p301 = por %p299, %p300
      %p302 = scmp.ne.s32.totalorder %s294, %s297
      %p303 = scmp.eq.s32.totalorder %s33, 0
      %p304 = por %p302, %p303
      %p305 = scmp.ne.s32.totalorder %s294, %s297
      %p306 = scmp.eq.s32.totalorder %s38, 1
      %p307 = por %p305, %p306
      %p308 = scmp.ne.s32.totalorder %s297, %s298
      %p309 = scmp.eq.s32.totalorder %s38, 0
      %p310 = por %p308, %p309
      %p311 = scmp.ne.s32.totalorder %s297, %s298
      %p312 = scmp.eq.s32.totalorder %s39, 1
      %p313 = por %p311, %p312
      %p315 = scmp.ne.s32.totalorder %s298, %s314
      %p316 = scmp.eq.s32.totalorder %s39, 0
      %p317 = por %p315, %p316
      %p318 = scmp.le.s32.totalorder 1, %s33
      %p319 = scmp.lt.s32.totalorder %s33, 3
      %p320 = pnand %p318, %p319
      %p321 = pneg %p320
      // Predicated region
      $region9: #{tpu_custom_call.1} parent=5 // pred_check
        _
      $region10: #{tpu_custom_call.1} parent=5 // pred_check_branch
        %323 = sbr.rel (%p320) target = $region12
      $region11: #{tpu_custom_call.1} parent=5 // pred_region
        %s324 = ssub.s32 %s33, 1
        // Predicated region
        $region13: #{tpu_custom_call.1} parent=11 // pred_check
          %p325 = pneg %p106
        $region14: #{tpu_custom_call.1} parent=11 // pred_check_branch
          %327 = sbr.rel (%p325) target = $region16
        $region15: #{tpu_custom_call.1} parent=11 // pred_region
          %s329 = ssub.s32 256, 256
          %330 = vsyncadd [#allocation6], %s329
          %s331 = sshll.u32 [#allocation7], 4
          %s332 = int_to_ptr.vmem [resolvable:$true] %s331
          %337 = dma.hbm_to_vmem [thread:$0]  %s2, 256, %s332, [#allocation6], 128, 128, 8
        $region16: #{tpu_custom_call.1} parent=11 // pred_fallthru
          _
        // Predicated region
        $region17: #{tpu_custom_call.1} parent=11 // pred_check
          %p338 = pneg %p127
        $region18: #{tpu_custom_call.1} parent=11 // pred_check_branch
          %340 = sbr.rel (%p338) target = $region20
        $region19: #{tpu_custom_call.1} parent=11 // pred_region
          %s342 = ssub.s32 256, 256
          %343 = vsyncadd [#allocation9], %s342
          %s344 = sshll.u32 [#allocation8], 4
          %s345 = int_to_ptr.vmem [resolvable:$true] %s344
          %350 = dma.hbm_to_vmem [thread:$0]  %s3, 256, %s345, [#allocation9], 128, 128, 8
        $region20: #{tpu_custom_call.1} parent=11 // pred_fallthru
          _
        // Predicated region
        $region21: #{tpu_custom_call.1} parent=11 // pred_check
          %p351 = pneg %p148
        $region22: #{tpu_custom_call.1} parent=11 // pred_check_branch
          %353 = sbr.rel (%p351) target = $region24
        $region23: #{tpu_custom_call.1} parent=11 // pred_region
          %s355 = ssub.s32 256, 256
          %356 = vsyncadd [#allocation9], %s355
          %s357 = sshll.u32 [#allocation10], 4
          %s358 = int_to_ptr.vmem [resolvable:$true] %s357
          %363 = dma.hbm_to_vmem [thread:$0]  %s4, 256, %s358, [#allocation9], 128, 128, 8
        $region24: #{tpu_custom_call.1} parent=11 // pred_fallthru
          _
        // Predicated region
        $region25: #{tpu_custom_call.1} parent=11 // pred_check
          %p364 = pneg %p169
        $region26: #{tpu_custom_call.1} parent=11 // pred_check_branch
          %366 = sbr.rel (%p364) target = $region28
        $region27: #{tpu_custom_call.1} parent=11 // pred_region
          _
        $region28: #{tpu_custom_call.1} parent=11 // pred_fallthru
          _
        // Predicated region
        $region29: #{tpu_custom_call.1} parent=11 // pred_check
          %p367 = pneg %p190
        $region30: #{tpu_custom_call.1} parent=11 // pred_check_branch
          %369 = sbr.rel (%p367) target = $region32
        $region31: #{tpu_custom_call.1} parent=11 // pred_region
          %s371 = ssub.s32 2048, 2048
          %372 = vsyncadd [#allocation12], %s371
          %s373 = sshll.u32 [#allocation11], 4
          %s374 = int_to_ptr.vmem [resolvable:$true] %s373
          %379 = dma.hbm_to_vmem [thread:$0]  %s6, 2048, %s374, [#allocation12], 128, 128, 8
        $region32: #{tpu_custom_call.1} parent=11 // pred_fallthru
          _
        // Predicated region
        $region33: #{tpu_custom_call.1} parent=11 // pred_check
          %p380 = pneg %p211
        $region34: #{tpu_custom_call.1} parent=11 // pred_check_branch
          %382 = sbr.rel (%p380) target = $region36
        $region35: #{tpu_custom_call.1} parent=11 // pred_region
          %s384 = ssub.s32 2048, 2048
          %385 = vsyncadd [#allocation12], %s384
          %s386 = sshll.u32 [#allocation13], 4
          %s387 = int_to_ptr.vmem [resolvable:$true] %s386
          %392 = dma.hbm_to_vmem [thread:$0]  %s7, 2048, %s387, [#allocation12], 128, 128, 8
        $region36: #{tpu_custom_call.1} parent=11 // pred_fallthru
          _
        // Predicated region
        $region37: #{tpu_custom_call.1} parent=11 // pred_check
          %p393 = pneg %p232
        $region38: #{tpu_custom_call.1} parent=11 // pred_check_branch
          %395 = sbr.rel (%p393) target = $region40
        $region39: #{tpu_custom_call.1} parent=11 // pred_region
          %s397 = ssub.s32 2048, 2048
          %398 = vsyncadd [#allocation15], %s397
          %s399 = sshll.u32 [#allocation14], 4
          %s400 = int_to_ptr.vmem [resolvable:$true] %s399
          %405 = dma.hbm_to_vmem [thread:$0]  %s8, 2048, %s400, [#allocation15], 128, 128, 8
        $region40: #{tpu_custom_call.1} parent=11 // pred_fallthru
          _
      $region12: #{tpu_custom_call.1} parent=5 // pred_fallthru
        _
      %p406 = scmp.lt.s32.totalorder %s33, 2
      // Predicated region
      $region41: #{tpu_custom_call.1} parent=5 // pred_check
        %p407 = pneg %p406
      $region42: #{tpu_custom_call.1} parent=5 // pred_check_branch
        %409 = sbr.rel (%p407) target = $region44
      $region43: #{tpu_custom_call.1} parent=5 // pred_region
        // Predicated region
        $region45: #{tpu_custom_call.1} parent=43 // pred_check
          %p410 = pneg %p53
        $region46: #{tpu_custom_call.1} parent=43 // pred_check_branch
          %412 = sbr.rel (%p410) target = $region48
        $region47: #{tpu_custom_call.1} parent=43 // pred_region
          %s413 = sand.u32 %s43, 1
          %s414 = scalar_lea.sflag [#allocation3], %s413
          %s415 = sand.u32 %s43, 1
          %s416 = smul.addr %s415, 16
          %s417 = scalar_lea.vmem [#allocation2], %s416
          %s419 = ssub.s32 256, 256
          %420 = vsyncadd %s414, %s419
          %s421 = smul.addr %s33, 128
          %s422 = scalar_lea.hbm %s0, %s421
          %s423 = sshll.u32 %s417, 4
          %s424 = int_to_ptr.vmem [resolvable:$true] %s423
          %429 = dma.hbm_to_vmem [thread:$0]  %s422, 256, %s424, %s414, 256, 128, 8
        $region48: #{tpu_custom_call.1} parent=43 // pred_fallthru
          _
        // Predicated region
        $region49: #{tpu_custom_call.1} parent=43 // pred_check
          %p430 = pneg %p79
        $region50: #{tpu_custom_call.1} parent=43 // pred_check_branch
          %432 = sbr.rel (%p430) target = $region52
        $region51: #{tpu_custom_call.1} parent=43 // pred_region
          %s433 = sand.u32 %s33, 1
          %s434 = scalar_lea.sflag [#allocation6], %s433
          %s435 = sand.u32 %s69, 1
          %s436 = smul.addr %s435, 16
          %s437 = scalar_lea.vmem [#allocation5], %s436
          %s439 = ssub.s32 256, 256
          %440 = vsyncadd %s434, %s439
          %s441 = smul.addr %s33, 128
          %s442 = scalar_lea.hbm %s1, %s441
          %s443 = sshll.u32 %s437, 4
          %s444 = int_to_ptr.vmem [resolvable:$true] %s443
          %449 = dma.hbm_to_vmem [thread:$0]  %s442, 256, %s444, %s434, 256, 128, 8
        $region52: #{tpu_custom_call.1} parent=43 // pred_fallthru
          _
      $region44: #{tpu_custom_call.1} parent=5 // pred_fallthru
        _
      %p450 = scmp.le.s32.totalorder 1, %s33
      %p451 = scmp.lt.s32.totalorder %s33, 3
      %p452 = pnand %p450, %p451
      %p453 = pneg %p452
      // Predicated region
      $region53: #{tpu_custom_call.1} parent=5 // pred_check
        _
      $region54: #{tpu_custom_call.1} parent=5 // pred_check_branch
        %455 = sbr.rel (%p452) target = $region56
      $region55: #{tpu_custom_call.1} parent=5 // pred_region
        %s456 = ssub.s32 %s33, 1
        %s457 = sand.u32 %s46, 1
        %s458 = scalar_lea.sflag [#allocation3], %s457
        %s459 = sand.u32 %s46, 1
        %s460 = smul.addr %s459, 16
        %s461 = scalar_lea.vmem [#allocation2], %s460
        // Predicated region
        $region57: #{tpu_custom_call.1} parent=55 // pred_check
          %p462 = pneg %p59
        $region58: #{tpu_custom_call.1} parent=55 // pred_check_branch
          %464 = sbr.rel (%p462) target = $region60
        $region59: #{tpu_custom_call.1} parent=55 // pred_region
          %465 = dma.done %s458, 256
        $region60: #{tpu_custom_call.1} parent=55 // pred_fallthru
          _
        %s466 = sand.u32 %s38, 1
        %s467 = scalar_lea.sflag [#allocation6], %s466
        %s468 = sand.u32 %s72, 1
        %s469 = smul.addr %s468, 16
        %s470 = scalar_lea.vmem [#allocation5], %s469
        // Predicated region
        $region61: #{tpu_custom_call.1} parent=55 // pred_check
          %p471 = pneg %p85
        $region62: #{tpu_custom_call.1} parent=55 // pred_check_branch
          %473 = sbr.rel (%p471) target = $region64
        $region63: #{tpu_custom_call.1} parent=55 // pred_region
          %474 = dma.done %s467, 256
        $region64: #{tpu_custom_call.1} parent=55 // pred_fallthru
          _
        // Predicated region
        $region65: #{tpu_custom_call.1} parent=55 // pred_check
          %p475 = pneg %p106
        $region66: #{tpu_custom_call.1} parent=55 // pred_check_branch
          %477 = sbr.rel (%p475) target = $region68
        $region67: #{tpu_custom_call.1} parent=55 // pred_region
          %478 = dma.done [#allocation6], 256
        $region68: #{tpu_custom_call.1} parent=55 // pred_fallthru
          _
        // Predicated region
        $region69: #{tpu_custom_call.1} parent=55 // pred_check
          %p479 = pneg %p127
        $region70: #{tpu_custom_call.1} parent=55 // pred_check_branch
          %481 = sbr.rel (%p479) target = $region72
        $region71: #{tpu_custom_call.1} parent=55 // pred_region
          %482 = dma.done [#allocation9], 256
        $region72: #{tpu_custom_call.1} parent=55 // pred_fallthru
          _
        // Predicated region
        $region73: #{tpu_custom_call.1} parent=55 // pred_check
          %p483 = pneg %p148
        $region74: #{tpu_custom_call.1} parent=55 // pred_check_branch
          %485 = sbr.rel (%p483) target = $region76
        $region75: #{tpu_custom_call.1} parent=55 // pred_region
          %486 = dma.done [#allocation9], 256
        $region76: #{tpu_custom_call.1} parent=55 // pred_fallthru
          _
        // Predicated region
        $region77: #{tpu_custom_call.1} parent=55 // pred_check
          %p487 = pneg %p190
        $region78: #{tpu_custom_call.1} parent=55 // pred_check_branch
          %489 = sbr.rel (%p487) target = $region80
        $region79: #{tpu_custom_call.1} parent=55 // pred_region
          %490 = dma.done [#allocation12], 2048
        $region80: #{tpu_custom_call.1} parent=55 // pred_fallthru
          _
        // Predicated region
        $region81: #{tpu_custom_call.1} parent=55 // pred_check
          %p491 = pneg %p211
        $region82: #{tpu_custom_call.1} parent=55 // pred_check_branch
          %493 = sbr.rel (%p491) target = $region84
        $region83: #{tpu_custom_call.1} parent=55 // pred_region
          %494 = dma.done [#allocation12], 2048
        $region84: #{tpu_custom_call.1} parent=55 // pred_fallthru
          _
        // Predicated region
        $region85: #{tpu_custom_call.1} parent=55 // pred_check
          %p495 = pneg %p232
        $region86: #{tpu_custom_call.1} parent=55 // pred_check_branch
          %497 = sbr.rel (%p495) target = $region88
        $region87: #{tpu_custom_call.1} parent=55 // pred_region
          %498 = dma.done [#allocation15], 2048
        $region88: #{tpu_custom_call.1} parent=55 // pred_fallthru
          _
        %s499 = sand.u32 %s46, 1
        %s500 = scalar_lea.sflag [#allocation3], %s499
        %s501 = sand.u32 %s46, 1
        %s502 = smul.addr %s501, 16
        %s503 = scalar_lea.vmem [#allocation2], %s502
        %p504 = pneg %p59
        %p505 = pneg %p56
        %s506 = sand.u32 %s38, 1
        %s507 = scalar_lea.sflag [#allocation6], %s506
        %s508 = sand.u32 %s72, 1
        %s509 = smul.addr %s508, 16
        %s510 = scalar_lea.vmem [#allocation5], %s509
        %p511 = pneg %p85
        %p512 = pneg %p82
        %p513 = pneg %p106
        %p514 = pneg %p103
        %p515 = pneg %p127
        %p516 = pneg %p124
        %p517 = pneg %p148
        %p518 = pneg %p145
        %p519 = pneg %p169
        %p520 = pneg %p166
        %p521 = pneg %p190
        %p522 = pneg %p187
        %p523 = pneg %p211
        %p524 = pneg %p208
        %p525 = pneg %p232
        %p526 = pneg %p229
        %p527 = pneg %p258
        %p528 = pneg %p255
        %s529 = sand.u32 %s245, 1
        %s530 = scalar_lea.sflag [#allocation4], %s529
        %s531 = sand.u32 %s245, 1
        %s532 = smul.addr %s531, 32
        %s533 = scalar_lea.vmem [#allocation16], %s532
        %p534 = pneg %p284
        %p535 = pneg %p281
        %s536 = sand.u32 %s38, 1
        %s537 = scalar_lea.sflag [#allocation18], %s536
        %s538 = sand.u32 %s271, 1
        %s539 = smul.addr %s538, 32
        %s540 = scalar_lea.vmem [#allocation17], %s539
        %p541 = pneg %p310
        %p542 = pneg %p307
        %s543 = sand.u32 %s38, 1
        %s544 = scalar_lea.sflag [#allocation18], %s543
        %s545 = sand.u32 %s297, 1
        %s546 = smul.addr %s545, 16
        %s547 = scalar_lea.vmem [#allocation19], %s546
        %v548 = vld [vmem:[%s461] sm:$0xff]
        %v549 = vld [vmem:[%s461 + $0x8] sm:$0xff]
        %v550 = vld [vmem:[%s470] sm:$0xff]
        %v551 = vld [vmem:[%s470 + $0x8] sm:$0xff]
        %v552 = vld [vmem:[#allocation7] sm:$0xff]
        %v553 = vld [vmem:[#allocation7 + $0x8] sm:$0xff]
        %v554 = vld [vmem:[#allocation8] sm:$0xff]
        %v555 = vld [vmem:[#allocation8 + $0x8] sm:$0xff]
        %v556 = vld [vmem:[#allocation10] sm:$0xff]
        %v557 = vld [vmem:[#allocation10 + $0x8] sm:$0xff]
        %v558 = vld [vmem:[%s5] sm:$0xff]
        %v559 = vld [vmem:[%s5 + $0x8] sm:$0xff]
        %v560 = vld [vmem:[#allocation11] sm:$0xff]
        %v561 = vld [vmem:[#allocation11 + $0x8] sm:$0xff]
        %v562 = vld [vmem:[#allocation11 + $0x10] sm:$0xff]
        %v563 = vld [vmem:[#allocation11 + $0x18] sm:$0xff]
        %v564 = vld [vmem:[#allocation11 + $0x20] sm:$0xff]
        %v565 = vld [vmem:[#allocation11 + $0x28] sm:$0xff]
        %v566 = vld [vmem:[#allocation11 + $0x30] sm:$0xff]
        %v567 = vld [vmem:[#allocation11 + $0x38] sm:$0xff]
        %v568 = vld [vmem:[#allocation11 + $0x40] sm:$0xff]
        %v569 = vld [vmem:[#allocation11 + $0x48] sm:$0xff]
        %v570 = vld [vmem:[#allocation11 + $0x50] sm:$0xff]
        %v571 = vld [vmem:[#allocation11 + $0x58] sm:$0xff]
        %v572 = vld [vmem:[#allocation11 + $0x60] sm:$0xff]
        %v573 = vld [vmem:[#allocation11 + $0x68] sm:$0xff]
        %v574 = vld [vmem:[#allocation11 + $0x70] sm:$0xff]
        %v575 = vld [vmem:[#allocation11 + $0x78] sm:$0xff]
        %v576 = vld [vmem:[#allocation13] sm:$0xff]
        %v577 = vld [vmem:[#allocation13 + $0x8] sm:$0xff]
        %v578 = vld [vmem:[#allocation13 + $0x10] sm:$0xff]
        %v579 = vld [vmem:[#allocation13 + $0x18] sm:$0xff]
        %v580 = vld [vmem:[#allocation13 + $0x20] sm:$0xff]
        %v581 = vld [vmem:[#allocation13 + $0x28] sm:$0xff]
        %v582 = vld [vmem:[#allocation13 + $0x30] sm:$0xff]
        %v583 = vld [vmem:[#allocation13 + $0x38] sm:$0xff]
        %v584 = vld [vmem:[#allocation13 + $0x40] sm:$0xff]
        %v585 = vld [vmem:[#allocation13 + $0x48] sm:$0xff]
        %v586 = vld [vmem:[#allocation13 + $0x50] sm:$0xff]
        %v587 = vld [vmem:[#allocation13 + $0x58] sm:$0xff]
        %v588 = vld [vmem:[#allocation13 + $0x60] sm:$0xff]
        %v589 = vld [vmem:[#allocation13 + $0x68] sm:$0xff]
        %v590 = vld [vmem:[#allocation13 + $0x70] sm:$0xff]
        %v591 = vld [vmem:[#allocation13 + $0x78] sm:$0xff]
        %v592 = vld [vmem:[#allocation14] sm:$0xff]
        %v593 = vld [vmem:[#allocation14 + $0x8] sm:$0xff]
        %v594 = vld [vmem:[#allocation14 + $0x10] sm:$0xff]
        %v595 = vld [vmem:[#allocation14 + $0x18] sm:$0xff]
        %v596 = vld [vmem:[#allocation14 + $0x20] sm:$0xff]
        %v597 = vld [vmem:[#allocation14 + $0x28] sm:$0xff]
        %v598 = vld [vmem:[#allocation14 + $0x30] sm:$0xff]
        %v599 = vld [vmem:[#allocation14 + $0x38] sm:$0xff]
        %v600 = vld [vmem:[#allocation14 + $0x40] sm:$0xff]
        %v601 = vld [vmem:[#allocation14 + $0x48] sm:$0xff]
        %v602 = vld [vmem:[#allocation14 + $0x50] sm:$0xff]
        %v603 = vld [vmem:[#allocation14 + $0x58] sm:$0xff]
        %v604 = vld [vmem:[#allocation14 + $0x60] sm:$0xff]
        %v605 = vld [vmem:[#allocation14 + $0x68] sm:$0xff]
        %v606 = vld [vmem:[#allocation14 + $0x70] sm:$0xff]
        %v607 = vld [vmem:[#allocation14 + $0x78] sm:$0xff]
        %vm608 = vcmask 130048
        %v610 = vsel %vm608, %v552, 0
        %v613 = vsel %vm608, %v553, 0
        %615 = vmatprep.subr.mxu0 0.0
        %616 = vmatpush1.msra.mxu0 %v548
        %617 = vmatprep.subr.mxu0 0.0
        %618 = vmatpush1.msra.mxu0 %v549
        %619 = vmatprep.subr.mxu0 0.0
        %620 = vmatpush1.msra.mxu0 0.0
        %621 = vmatprep.subr.mxu0 0.0
        %622 = vmatpush1.msra.mxu0 0.0
        %623 = vmatprep.subr.mxu0 0.0
        %624 = vmatpush1.msra.mxu0 0.0
        %625 = vmatprep.subr.mxu0 0.0
        %626 = vmatpush1.msra.mxu0 0.0
        %627 = vmatprep.subr.mxu0 0.0
        %628 = vmatpush1.msra.mxu0 0.0
        %629 = vmatprep.subr.mxu0 0.0
        %630 = vmatpush1.msra.mxu0 0.0
        %631 = vmatprep.subr.mxu0 0.0
        %632 = vmatpush1.msra.mxu0 0.0
        %633 = vmatprep.subr.mxu0 0.0
        %634 = vmatpush1.msra.mxu0 0.0
        %635 = vmatprep.subr.mxu0 0.0
        %636 = vmatpush1.msra.mxu0 0.0
        %637 = vmatprep.subr.mxu0 0.0
        %638 = vmatpush1.msra.mxu0 0.0
        %639 = vmatprep.subr.mxu0 0.0
        %640 = vmatpush1.msra.mxu0 0.0
        %641 = vmatprep.subr.mxu0 0.0
        %642 = vmatpush1.msra.mxu0 0.0
        %643 = vmatprep.subr.mxu0 0.0
        %644 = vmatpush1.msra.mxu0 0.0
        %645 = vmatprep.subr.mxu0 0.0
        %646 = vmatpush1.msra.mxu0 0.0
        %647 = vmatprep.subr.mxu0 0.0
        %648 = vmatpush1.msra.mxu0 0.0
        %649 = vmatprep.subr.mxu0 0.0
        %650 = vmatpush1.msra.mxu0 0.0
        %651 = vmatprep.subr.mxu0 0.0
        %652 = vmatpush1.msra.mxu0 0.0
        %653 = vmatprep.subr.mxu0 0.0
        %654 = vmatpush1.msra.mxu0 0.0
        %655 = vmatprep.subr.mxu0 0.0
        %656 = vmatpush1.msra.mxu0 0.0
        %657 = vmatprep.subr.mxu0 0.0
        %658 = vmatpush1.msra.mxu0 0.0
        %659 = vmatprep.subr.mxu0 0.0
        %660 = vmatpush1.msra.mxu0 0.0
        %661 = vmatprep.subr.mxu0 0.0
        %662 = vmatpush1.msra.mxu0 0.0
        %663 = vmatprep.subr.mxu0 0.0
        %664 = vmatpush1.msra.mxu0 0.0
        %665 = vmatprep.subr.mxu0 0.0
        %666 = vmatpush1.msra.mxu0 0.0
        %667 = vmatprep.subr.mxu0 0.0
        %668 = vmatpush1.msra.mxu0 0.0
        %669 = vmatprep.subr.mxu0 0.0
        %670 = vmatpush1.msra.mxu0 0.0
        %671 = vmatprep.subr.mxu0 0.0
        %672 = vmatpush1.msra.mxu0 0.0
        %673 = vmatprep.subr.mxu0 0.0
        %674 = vmatpush1.msra.mxu0 0.0
        %675 = vmatprep.subr.mxu0 0.0
        %676 = vmatpush1.msra.mxu0 0.0
        %677 = vmatprep.subr.mxu0 0.0
        %678 = vmatpush1.msra.mxu0 0.0
        %679 = vmatprep.mubr.f32.mxu0 0.0
        %680 = vmatmul.mubr.f32.gmra.mrb[0].mxu0 %v610
        %v681 = vpop.f32.mrb[0].mxu0
        %v682 = vadd.f32 0.0, %v681
        %v683 = vpop.f32.mrb[0].mxu0
        %684 = vmatprep.mubr.f32.mxu0 0.0
        %685 = vmatmul.mubr.f32.gmra.mrb[0].mxu0 %v613
        %v686 = vpop.f32.mrb[0].mxu0
        %v687 = vadd.f32 0.0, %v686
        %v688 = vpop.f32.mrb[0].mxu0
        %689 = vdwg.mxu0
        %v691 = vsel %vm608, %v554, 0
        %v694 = vsel %vm608, %v555, 0
        %696 = vmatprep.subr.mxu0 0.0
        %697 = vmatpush1.msra.mxu0 %v548
        %698 = vmatprep.subr.mxu0 0.0
        %699 = vmatpush1.msra.mxu0 %v549
        %700 = vmatprep.subr.mxu0 0.0
        %701 = vmatpush1.msra.mxu0 0.0
        %702 = vmatprep.subr.mxu0 0.0
        %703 = vmatpush1.msra.mxu0 0.0
        %704 = vmatprep.subr.mxu0 0.0
        %705 = vmatpush1.msra.mxu0 0.0
        %706 = vmatprep.subr.mxu0 0.0
        %707 = vmatpush1.msra.mxu0 0.0
        %708 = vmatprep.subr.mxu0 0.0
        %709 = vmatpush1.msra.mxu0 0.0
        %710 = vmatprep.subr.mxu0 0.0
        %711 = vmatpush1.msra.mxu0 0.0
        %712 = vmatprep.subr.mxu0 0.0
        %713 = vmatpush1.msra.mxu0 0.0
        %714 = vmatprep.subr.mxu0 0.0
        %715 = vmatpush1.msra.mxu0 0.0
        %716 = vmatprep.subr.mxu0 0.0
        %717 = vmatpush1.msra.mxu0 0.0
        %718 = vmatprep.subr.mxu0 0.0
        %719 = vmatpush1.msra.mxu0 0.0
        %720 = vmatprep.subr.mxu0 0.0
        %721 = vmatpush1.msra.mxu0 0.0
        %722 = vmatprep.subr.mxu0 0.0
        %723 = vmatpush1.msra.mxu0 0.0
        %724 = vmatprep.subr.mxu0 0.0
        %725 = vmatpush1.msra.mxu0 0.0
        %726 = vmatprep.subr.mxu0 0.0
        %727 = vmatpush1.msra.mxu0 0.0
        %728 = vmatprep.subr.mxu0 0.0
        %729 = vmatpush1.msra.mxu0 0.0
        %730 = vmatprep.subr.mxu0 0.0
        %731 = vmatpush1.msra.mxu0 0.0
        %732 = vmatprep.subr.mxu0 0.0
        %733 = vmatpush1.msra.mxu0 0.0
        %734 = vmatprep.subr.mxu0 0.0
        %735 = vmatpush1.msra.mxu0 0.0
        %736 = vmatprep.subr.mxu0 0.0
        %737 = vmatpush1.msra.mxu0 0.0
        %738 = vmatprep.subr.mxu0 0.0
        %739 = vmatpush1.msra.mxu0 0.0
        %740 = vmatprep.subr.mxu0 0.0
        %741 = vmatpush1.msra.mxu0 0.0
        %742 = vmatprep.subr.mxu0 0.0
        %743 = vmatpush1.msra.mxu0 0.0
        %744 = vmatprep.subr.mxu0 0.0
        %745 = vmatpush1.msra.mxu0 0.0
        %746 = vmatprep.subr.mxu0 0.0
        %747 = vmatpush1.msra.mxu0 0.0
        %748 = vmatprep.subr.mxu0 0.0
        %749 = vmatpush1.msra.mxu0 0.0
        %750 = vmatprep.subr.mxu0 0.0
        %751 = vmatpush1.msra.mxu0 0.0
        %752 = vmatprep.subr.mxu0 0.0
        %753 = vmatpush1.msra.mxu0 0.0
        %754 = vmatprep.subr.mxu0 0.0
        %755 = vmatpush1.msra.mxu0 0.0
        %756 = vmatprep.subr.mxu0 0.0
        %757 = vmatpush1.msra.mxu0 0.0
        %758 = vmatprep.subr.mxu0 0.0
        %759 = vmatpush1.msra.mxu0 0.0
        %760 = vmatprep.mubr.f32.mxu0 0.0
        %761 = vmatmul.mubr.f32.gmra.mrb[0].mxu0 %v691
        %v762 = vpop.f32.mrb[0].mxu0
        %v763 = vadd.f32 0.0, %v762
        %v764 = vpop.f32.mrb[0].mxu0
        %765 = vmatprep.mubr.f32.mxu0 0.0
        %766 = vmatmul.mubr.f32.gmra.mrb[0].mxu0 %v694
        %v767 = vpop.f32.mrb[0].mxu0
        %v768 = vadd.f32 0.0, %v767
        %v769 = vpop.f32.mrb[0].mxu0
        %770 = vdwg.mxu0
        %v771 = vsub.f32 0.0, %v763
        %v772 = vsub.f32 0.0, %v768
        %v773 = vadd.f32 %v682, %v771
        %v774 = vadd.f32 %v687, %v772
        %775 = vmatprep.subr.mxu0 0.0
        %776 = vmatpush1.msra.mxu0 %v560
        %777 = vmatprep.subr.mxu0 0.0
        %778 = vmatpush1.msra.mxu0 %v561
        %779 = vmatprep.subr.mxu0 0.0
        %780 = vmatpush1.msra.mxu0 %v562
        %781 = vmatprep.subr.mxu0 0.0
        %782 = vmatpush1.msra.mxu0 %v563
        %783 = vmatprep.subr.mxu0 0.0
        %784 = vmatpush1.msra.mxu0 %v564
        %785 = vmatprep.subr.mxu0 0.0
        %786 = vmatpush1.msra.mxu0 %v565
        %787 = vmatprep.subr.mxu0 0.0
        %788 = vmatpush1.msra.mxu0 %v566
        %789 = vmatprep.subr.mxu0 0.0
        %790 = vmatpush1.msra.mxu0 %v567
        %791 = vmatprep.subr.mxu0 0.0
        %792 = vmatpush1.msra.mxu0 %v568
        %793 = vmatprep.subr.mxu0 0.0
        %794 = vmatpush1.msra.mxu0 %v569
        %795 = vmatprep.subr.mxu0 0.0
        %796 = vmatpush1.msra.mxu0 %v570
        %797 = vmatprep.subr.mxu0 0.0
        %798 = vmatpush1.msra.mxu0 %v571
        %799 = vmatprep.subr.mxu0 0.0
        %800 = vmatpush1.msra.mxu0 %v572
        %801 = vmatprep.subr.mxu0 0.0
        %802 = vmatpush1.msra.mxu0 %v573
        %803 = vmatprep.subr.mxu0 0.0
        %804 = vmatpush1.msra.mxu0 %v574
        %805 = vmatprep.subr.mxu0 0.0
        %806 = vmatpush1.msra.mxu0 %v575
        %807 = vmatprep.subr.mxu0 0.0
        %808 = vmatpush1.msra.mxu0 0.0
        %809 = vmatprep.subr.mxu0 0.0
        %810 = vmatpush1.msra.mxu0 0.0
        %811 = vmatprep.subr.mxu0 0.0
        %812 = vmatpush1.msra.mxu0 0.0
        %813 = vmatprep.subr.mxu0 0.0
        %814 = vmatpush1.msra.mxu0 0.0
        %815 = vmatprep.subr.mxu0 0.0
        %816 = vmatpush1.msra.mxu0 0.0
        %817 = vmatprep.subr.mxu0 0.0
        %818 = vmatpush1.msra.mxu0 0.0
        %819 = vmatprep.subr.mxu0 0.0
        %820 = vmatpush1.msra.mxu0 0.0
        %821 = vmatprep.subr.mxu0 0.0
        %822 = vmatpush1.msra.mxu0 0.0
        %823 = vmatprep.subr.mxu0 0.0
        %824 = vmatpush1.msra.mxu0 0.0
        %825 = vmatprep.subr.mxu0 0.0
        %826 = vmatpush1.msra.mxu0 0.0
        %827 = vmatprep.subr.mxu0 0.0
        %828 = vmatpush1.msra.mxu0 0.0
        %829 = vmatprep.subr.mxu0 0.0
        %830 = vmatpush1.msra.mxu0 0.0
        %831 = vmatprep.subr.mxu0 0.0
        %832 = vmatpush1.msra.mxu0 0.0
        %833 = vmatprep.subr.mxu0 0.0
        %834 = vmatpush1.msra.mxu0 0.0
        %835 = vmatprep.subr.mxu0 0.0
        %836 = vmatpush1.msra.mxu0 0.0
        %837 = vmatprep.subr.mxu0 0.0
        %838 = vmatpush1.msra.mxu0 0.0
        %839 = vmatprep.mubr.f32.mxu0 0.0
        %840 = vmatmul.mubr.f32.gmra.mrb[0].mxu0 %v773
        %v841 = vpop.f32.mrb[0].mxu0
        %v842 = vadd.f32 0.0, %v841
        %v843 = vpop.f32.mrb[0].mxu0
        %844 = vmatprep.mubr.f32.mxu0 0.0
        %845 = vmatmul.mubr.f32.gmra.mrb[0].mxu0 %v774
        %v846 = vpop.f32.mrb[0].mxu0
        %v847 = vadd.f32 0.0, %v846
        %v848 = vpop.f32.mrb[0].mxu0
        %849 = vdwg.mxu0
        %850 = vmatprep.subr.mxu0 0.0
        %851 = vmatpush1.msra.mxu0 %v592
        %852 = vmatprep.subr.mxu0 0.0
        %853 = vmatpush1.msra.mxu0 %v593
        %854 = vmatprep.subr.mxu0 0.0
        %855 = vmatpush1.msra.mxu0 %v594
        %856 = vmatprep.subr.mxu0 0.0
        %857 = vmatpush1.msra.mxu0 %v595
        %858 = vmatprep.subr.mxu0 0.0
        %859 = vmatpush1.msra.mxu0 %v596
        %860 = vmatprep.subr.mxu0 0.0
        %861 = vmatpush1.msra.mxu0 %v597
        %862 = vmatprep.subr.mxu0 0.0
        %863 = vmatpush1.msra.mxu0 %v598
        %864 = vmatprep.subr.mxu0 0.0
        %865 = vmatpush1.msra.mxu0 %v599
        %866 = vmatprep.subr.mxu0 0.0
        %867 = vmatpush1.msra.mxu0 %v600
        %868 = vmatprep.subr.mxu0 0.0
        %869 = vmatpush1.msra.mxu0 %v601
        %870 = vmatprep.subr.mxu0 0.0
        %871 = vmatpush1.msra.mxu0 %v602
        %872 = vmatprep.subr.mxu0 0.0
        %873 = vmatpush1.msra.mxu0 %v603
        %874 = vmatprep.subr.mxu0 0.0
        %875 = vmatpush1.msra.mxu0 %v604
        %876 = vmatprep.subr.mxu0 0.0
        %877 = vmatpush1.msra.mxu0 %v605
        %878 = vmatprep.subr.mxu0 0.0
        %879 = vmatpush1.msra.mxu0 %v606
        %880 = vmatprep.subr.mxu0 0.0
        %881 = vmatpush1.msra.mxu0 %v607
        %882 = vmatprep.subr.mxu0 0.0
        %883 = vmatpush1.msra.mxu0 0.0
        %884 = vmatprep.subr.mxu0 0.0
        %885 = vmatpush1.msra.mxu0 0.0
        %886 = vmatprep.subr.mxu0 0.0
        %887 = vmatpush1.msra.mxu0 0.0
        %888 = vmatprep.subr.mxu0 0.0
        %889 = vmatpush1.msra.mxu0 0.0
        %890 = vmatprep.subr.mxu0 0.0
        %891 = vmatpush1.msra.mxu0 0.0
        %892 = vmatprep.subr.mxu0 0.0
        %893 = vmatpush1.msra.mxu0 0.0
        %894 = vmatprep.subr.mxu0 0.0
        %895 = vmatpush1.msra.mxu0 0.0
        %896 = vmatprep.subr.mxu0 0.0
        %897 = vmatpush1.msra.mxu0 0.0
        %898 = vmatprep.subr.mxu0 0.0
        %899 = vmatpush1.msra.mxu0 0.0
        %900 = vmatprep.subr.mxu0 0.0
        %901 = vmatpush1.msra.mxu0 0.0
        %902 = vmatprep.subr.mxu0 0.0
        %903 = vmatpush1.msra.mxu0 0.0
        %904 = vmatprep.subr.mxu0 0.0
        %905 = vmatpush1.msra.mxu0 0.0
        %906 = vmatprep.subr.mxu0 0.0
        %907 = vmatpush1.msra.mxu0 0.0
        %908 = vmatprep.subr.mxu0 0.0
        %909 = vmatpush1.msra.mxu0 0.0
        %910 = vmatprep.subr.mxu0 0.0
        %911 = vmatpush1.msra.mxu0 0.0
        %912 = vmatprep.subr.mxu0 0.0
        %913 = vmatpush1.msra.mxu0 0.0
        %914 = vmatprep.mubr.f32.mxu0 0.0
        %915 = vmatmul.mubr.f32.gmra.mrb[0].mxu0 %v771
        %v916 = vpop.f32.mrb[0].mxu0
        %v917 = vadd.f32 0.0, %v916
        %v918 = vpop.f32.mrb[0].mxu0
        %919 = vmatprep.mubr.f32.mxu0 0.0
        %920 = vmatmul.mubr.f32.gmra.mrb[0].mxu0 %v772
        %v921 = vpop.f32.mrb[0].mxu0
        %v922 = vadd.f32 0.0, %v921
        %v923 = vpop.f32.mrb[0].mxu0
        %924 = vdwg.mxu0
        %v925 = vsub.f32 %v842, %v917
        %v926 = vsub.f32 %v847, %v922
        %927 = vmatprep.subr.mxu0 0.0
        %928 = vmatpush1.msra.mxu0 %v576
        %929 = vmatprep.subr.mxu0 0.0
        %930 = vmatpush1.msra.mxu0 %v577
        %931 = vmatprep.subr.mxu0 0.0
        %932 = vmatpush1.msra.mxu0 %v578
        %933 = vmatprep.subr.mxu0 0.0
        %934 = vmatpush1.msra.mxu0 %v579
        %935 = vmatprep.subr.mxu0 0.0
        %936 = vmatpush1.msra.mxu0 %v580
        %937 = vmatprep.subr.mxu0 0.0
        %938 = vmatpush1.msra.mxu0 %v581
        %939 = vmatprep.subr.mxu0 0.0
        %940 = vmatpush1.msra.mxu0 %v582
        %941 = vmatprep.subr.mxu0 0.0
        %942 = vmatpush1.msra.mxu0 %v583
        %943 = vmatprep.subr.mxu0 0.0
        %944 = vmatpush1.msra.mxu0 %v584
        %945 = vmatprep.subr.mxu0 0.0
        %946 = vmatpush1.msra.mxu0 %v585
        %947 = vmatprep.subr.mxu0 0.0
        %948 = vmatpush1.msra.mxu0 %v586
        %949 = vmatprep.subr.mxu0 0.0
        %950 = vmatpush1.msra.mxu0 %v587
        %951 = vmatprep.subr.mxu0 0.0
        %952 = vmatpush1.msra.mxu0 %v588
        %953 = vmatprep.subr.mxu0 0.0
        %954 = vmatpush1.msra.mxu0 %v589
        %955 = vmatprep.subr.mxu0 0.0
        %956 = vmatpush1.msra.mxu0 %v590
        %957 = vmatprep.subr.mxu0 0.0
        %958 = vmatpush1.msra.mxu0 %v591
        %959 = vmatprep.subr.mxu0 0.0
        %960 = vmatpush1.msra.mxu0 0.0
        %961 = vmatprep.subr.mxu0 0.0
        %962 = vmatpush1.msra.mxu0 0.0
        %963 = vmatprep.subr.mxu0 0.0
        %964 = vmatpush1.msra.mxu0 0.0
        %965 = vmatprep.subr.mxu0 0.0
        %966 = vmatpush1.msra.mxu0 0.0
        %967 = vmatprep.subr.mxu0 0.0
        %968 = vmatpush1.msra.mxu0 0.0
        %969 = vmatprep.subr.mxu0 0.0
        %970 = vmatpush1.msra.mxu0 0.0
        %971 = vmatprep.subr.mxu0 0.0
        %972 = vmatpush1.msra.mxu0 0.0
        %973 = vmatprep.subr.mxu0 0.0
        %974 = vmatpush1.msra.mxu0 0.0
        %975 = vmatprep.subr.mxu0 0.0
        %976 = vmatpush1.msra.mxu0 0.0
        %977 = vmatprep.subr.mxu0 0.0
        %978 = vmatpush1.msra.mxu0 0.0
        %979 = vmatprep.subr.mxu0 0.0
        %980 = vmatpush1.msra.mxu0 0.0
        %981 = vmatprep.subr.mxu0 0.0
        %982 = vmatpush1.msra.mxu0 0.0
        %983 = vmatprep.subr.mxu0 0.0
        %984 = vmatpush1.msra.mxu0 0.0
        %985 = vmatprep.subr.mxu0 0.0
        %986 = vmatpush1.msra.mxu0 0.0
        %987 = vmatprep.subr.mxu0 0.0
        %988 = vmatpush1.msra.mxu0 0.0
        %989 = vmatprep.subr.mxu0 0.0
        %990 = vmatpush1.msra.mxu0 0.0
        %991 = vmatprep.mubr.f32.mxu0 0.0
        %992 = vmatmul.mubr.f32.gmra.mrb[0].mxu0 %v682
        %v993 = vpop.f32.mrb[0].mxu0
        %v994 = vadd.f32 0.0, %v993
        %v995 = vpop.f32.mrb[0].mxu0
        %996 = vmatprep.mubr.f32.mxu0 0.0
        %997 = vmatmul.mubr.f32.gmra.mrb[0].mxu0 %v687
        %v998 = vpop.f32.mrb[0].mxu0
        %v999 = vadd.f32 0.0, %v998
        %v1000 = vpop.f32.mrb[0].mxu0
        %1001 = vdwg.mxu0
        %v1002 = vsub.f32 %v842, %v994
        %v1003 = vsub.f32 %v847, %v999
        %v1004 = vmul.f32 %v925, %v550
        %v1005 = vmul.f32 %v926, %v551
        %v1006 = vmul.f32 %v1002, %v550
        %v1007 = vmul.f32 %v1003, %v551
        %1008 = vst [vmem:[%s533] sm:$0xff] %v1004
        %1009 = vst [vmem:[%s533 + $0x8] sm:$0xff] %v1005
        %s1010 = scalar_lea.vmem %s533, 16 [#allocation16]
        %1011 = vst [vmem:[%s1010] sm:$0xff] %v1006
        %1012 = vst [vmem:[%s1010 + $0x8] sm:$0xff] %v1007
        %v1013 = vadd.f32 %v1004, %v1006
        %v1014 = vadd.f32 %v1005, %v1007
        %1015 = vmatprep.subr.mxu0 0.0
        %1016 = vmatpush1.msra.mxu0 %v1013
        %1017 = vmatprep.subr.mxu0 0.0
        %1018 = vmatpush1.msra.mxu0 %v1014
        %1019 = vmatprep.subr.mxu0 0.0
        %1020 = vmatpush1.msra.mxu0 0.0
        %1021 = vmatprep.subr.mxu0 0.0
        %1022 = vmatpush1.msra.mxu0 0.0
        %1023 = vmatprep.subr.mxu0 0.0
        %1024 = vmatpush1.msra.mxu0 0.0
        %1025 = vmatprep.subr.mxu0 0.0
        %1026 = vmatpush1.msra.mxu0 0.0
        %1027 = vmatprep.subr.mxu0 0.0
        %1028 = vmatpush1.msra.mxu0 0.0
        %1029 = vmatprep.subr.mxu0 0.0
        %1030 = vmatpush1.msra.mxu0 0.0
        %1031 = vmatprep.subr.mxu0 0.0
        %1032 = vmatpush1.msra.mxu0 0.0
        %1033 = vmatprep.subr.mxu0 0.0
        %1034 = vmatpush1.msra.mxu0 0.0
        %1035 = vmatprep.subr.mxu0 0.0
        %1036 = vmatpush1.msra.mxu0 0.0
        %1037 = vmatprep.subr.mxu0 0.0
        %1038 = vmatpush1.msra.mxu0 0.0
        %1039 = vmatprep.subr.mxu0 0.0
        %1040 = vmatpush1.msra.mxu0 0.0
        %1041 = vmatprep.subr.mxu0 0.0
        %1042 = vmatpush1.msra.mxu0 0.0
        %1043 = vmatprep.subr.mxu0 0.0
        %1044 = vmatpush1.msra.mxu0 0.0
        %1045 = vmatprep.subr.mxu0 0.0
        %1046 = vmatpush1.msra.mxu0 0.0
        %1047 = vmatprep.subr.mxu0 0.0
        %1048 = vmatpush1.msra.mxu0 0.0
        %1049 = vmatprep.subr.mxu0 0.0
        %1050 = vmatpush1.msra.mxu0 0.0
        %1051 = vmatprep.subr.mxu0 0.0
        %1052 = vmatpush1.msra.mxu0 0.0
        %1053 = vmatprep.subr.mxu0 0.0
        %1054 = vmatpush1.msra.mxu0 0.0
        %1055 = vmatprep.subr.mxu0 0.0
        %1056 = vmatpush1.msra.mxu0 0.0
        %1057 = vmatprep.subr.mxu0 0.0
        %1058 = vmatpush1.msra.mxu0 0.0
        %1059 = vmatprep.subr.mxu0 0.0
        %1060 = vmatpush1.msra.mxu0 0.0
        %1061 = vmatprep.subr.mxu0 0.0
        %1062 = vmatpush1.msra.mxu0 0.0
        %1063 = vmatprep.subr.mxu0 0.0
        %1064 = vmatpush1.msra.mxu0 0.0
        %1065 = vmatprep.subr.mxu0 0.0
        %1066 = vmatpush1.msra.mxu0 0.0
        %1067 = vmatprep.subr.mxu0 0.0
        %1068 = vmatpush1.msra.mxu0 0.0
        %1069 = vmatprep.subr.mxu0 0.0
        %1070 = vmatpush1.msra.mxu0 0.0
        %1071 = vmatprep.subr.mxu0 0.0
        %1072 = vmatpush1.msra.mxu0 0.0
        %1073 = vmatprep.subr.mxu0 0.0
        %1074 = vmatpush1.msra.mxu0 0.0
        %1075 = vmatprep.subr.mxu0 0.0
        %1076 = vmatpush1.msra.mxu0 0.0
        %1077 = vmatprep.subr.mxu0 0.0
        %1078 = vmatpush1.msra.mxu0 0.0
        %1079 = vmatprep.mubr.f32.mxu0 0.0
        %1080 = vmatmul.mubr.f32.gmra.mrb[0].mxu0 %v610
        %v1081 = vpop.f32.mrb[0].mxu0
        %v1082 = vadd.f32 0.0, %v1081
        %v1083 = vpop.f32.mrb[0].mxu0
        %1084 = vmatprep.mubr.f32.mxu0 0.0
        %1085 = vmatmul.mubr.f32.gmra.mrb[0].mxu0 %v613
        %v1086 = vpop.f32.mrb[0].mxu0
        %v1087 = vadd.f32 0.0, %v1086
        %v1088 = vpop.f32.mrb[0].mxu0
        %1089 = vdwg.mxu0
        %v1091 = vsel %vm608, %v556, 0
        %v1094 = vsel %vm608, %v557, 0
        %1096 = vmatprep.subr.mxu0 0.0
        %1097 = vmatpush1.msra.mxu0 %v1006
        %1098 = vmatprep.subr.mxu0 0.0
        %1099 = vmatpush1.msra.mxu0 %v1007
        %1100 = vmatprep.subr.mxu0 0.0
        %1101 = vmatpush1.msra.mxu0 0.0
        %1102 = vmatprep.subr.mxu0 0.0
        %1103 = vmatpush1.msra.mxu0 0.0
        %1104 = vmatprep.subr.mxu0 0.0
        %1105 = vmatpush1.msra.mxu0 0.0
        %1106 = vmatprep.subr.mxu0 0.0
        %1107 = vmatpush1.msra.mxu0 0.0
        %1108 = vmatprep.subr.mxu0 0.0
        %1109 = vmatpush1.msra.mxu0 0.0
        %1110 = vmatprep.subr.mxu0 0.0
        %1111 = vmatpush1.msra.mxu0 0.0
        %1112 = vmatprep.subr.mxu0 0.0
        %1113 = vmatpush1.msra.mxu0 0.0
        %1114 = vmatprep.subr.mxu0 0.0
        %1115 = vmatpush1.msra.mxu0 0.0
        %1116 = vmatprep.subr.mxu0 0.0
        %1117 = vmatpush1.msra.mxu0 0.0
        %1118 = vmatprep.subr.mxu0 0.0
        %1119 = vmatpush1.msra.mxu0 0.0
        %1120 = vmatprep.subr.mxu0 0.0
        %1121 = vmatpush1.msra.mxu0 0.0
        %1122 = vmatprep.subr.mxu0 0.0
        %1123 = vmatpush1.msra.mxu0 0.0
        %1124 = vmatprep.subr.mxu0 0.0
        %1125 = vmatpush1.msra.mxu0 0.0
        %1126 = vmatprep.subr.mxu0 0.0
        %1127 = vmatpush1.msra.mxu0 0.0
        %1128 = vmatprep.subr.mxu0 0.0
        %1129 = vmatpush1.msra.mxu0 0.0
        %1130 = vmatprep.subr.mxu0 0.0
        %1131 = vmatpush1.msra.mxu0 0.0
        %1132 = vmatprep.subr.mxu0 0.0
        %1133 = vmatpush1.msra.mxu0 0.0
        %1134 = vmatprep.subr.mxu0 0.0
        %1135 = vmatpush1.msra.mxu0 0.0
        %1136 = vmatprep.subr.mxu0 0.0
        %1137 = vmatpush1.msra.mxu0 0.0
        %1138 = vmatprep.subr.mxu0 0.0
        %1139 = vmatpush1.msra.mxu0 0.0
        %1140 = vmatprep.subr.mxu0 0.0
        %1141 = vmatpush1.msra.mxu0 0.0
        %1142 = vmatprep.subr.mxu0 0.0
        %1143 = vmatpush1.msra.mxu0 0.0
        %1144 = vmatprep.subr.mxu0 0.0
        %1145 = vmatpush1.msra.mxu0 0.0
        %1146 = vmatprep.subr.mxu0 0.0
        %1147 = vmatpush1.msra.mxu0 0.0
        %1148 = vmatprep.subr.mxu0 0.0
        %1149 = vmatpush1.msra.mxu0 0.0
        %1150 = vmatprep.subr.mxu0 0.0
        %1151 = vmatpush1.msra.mxu0 0.0
        %1152 = vmatprep.subr.mxu0 0.0
        %1153 = vmatpush1.msra.mxu0 0.0
        %1154 = vmatprep.subr.mxu0 0.0
        %1155 = vmatpush1.msra.mxu0 0.0
        %1156 = vmatprep.subr.mxu0 0.0
        %1157 = vmatpush1.msra.mxu0 0.0
        %1158 = vmatprep.subr.mxu0 0.0
        %1159 = vmatpush1.msra.mxu0 0.0
        %1160 = vmatprep.mubr.f32.mxu0 0.0
        %1161 = vmatmul.mubr.f32.gmra.mrb[0].mxu0 %v1091
        %v1162 = vpop.f32.mrb[0].mxu0
        %v1163 = vadd.f32 0.0, %v1162
        %v1164 = vpop.f32.mrb[0].mxu0
        %1165 = vmatprep.mubr.f32.mxu0 0.0
        %1166 = vmatmul.mubr.f32.gmra.mrb[0].mxu0 %v1094
        %v1167 = vpop.f32.mrb[0].mxu0
        %v1168 = vadd.f32 0.0, %v1167
        %v1169 = vpop.f32.mrb[0].mxu0
        %1170 = vdwg.mxu0
        %v1171 = vsub.f32 %v1082, %v1163
        %v1172 = vsub.f32 %v1087, %v1168
        %v1174 = vsel %vm608, %v558, 0
        %v1177 = vsel %vm608, %v559, 0
        %1179 = vmatprep.subr.mxu0 0.0
        %1180 = vmatpush1.msra.mxu0 %v1004
        %1181 = vmatprep.subr.mxu0 0.0
        %1182 = vmatpush1.msra.mxu0 %v1005
        %1183 = vmatprep.subr.mxu0 0.0
        %1184 = vmatpush1.msra.mxu0 0.0
        %1185 = vmatprep.subr.mxu0 0.0
        %1186 = vmatpush1.msra.mxu0 0.0
        %1187 = vmatprep.subr.mxu0 0.0
        %1188 = vmatpush1.msra.mxu0 0.0
        %1189 = vmatprep.subr.mxu0 0.0
        %1190 = vmatpush1.msra.mxu0 0.0
        %1191 = vmatprep.subr.mxu0 0.0
        %1192 = vmatpush1.msra.mxu0 0.0
        %1193 = vmatprep.subr.mxu0 0.0
        %1194 = vmatpush1.msra.mxu0 0.0
        %1195 = vmatprep.subr.mxu0 0.0
        %1196 = vmatpush1.msra.mxu0 0.0
        %1197 = vmatprep.subr.mxu0 0.0
        %1198 = vmatpush1.msra.mxu0 0.0
        %1199 = vmatprep.subr.mxu0 0.0
        %1200 = vmatpush1.msra.mxu0 0.0
        %1201 = vmatprep.subr.mxu0 0.0
        %1202 = vmatpush1.msra.mxu0 0.0
        %1203 = vmatprep.subr.mxu0 0.0
        %1204 = vmatpush1.msra.mxu0 0.0
        %1205 = vmatprep.subr.mxu0 0.0
        %1206 = vmatpush1.msra.mxu0 0.0
        %1207 = vmatprep.subr.mxu0 0.0
        %1208 = vmatpush1.msra.mxu0 0.0
        %1209 = vmatprep.subr.mxu0 0.0
        %1210 = vmatpush1.msra.mxu0 0.0
        %1211 = vmatprep.subr.mxu0 0.0
        %1212 = vmatpush1.msra.mxu0 0.0
        %1213 = vmatprep.subr.mxu0 0.0
        %1214 = vmatpush1.msra.mxu0 0.0
        %1215 = vmatprep.subr.mxu0 0.0
        %1216 = vmatpush1.msra.mxu0 0.0
        %1217 = vmatprep.subr.mxu0 0.0
        %1218 = vmatpush1.msra.mxu0 0.0
        %1219 = vmatprep.subr.mxu0 0.0
        %1220 = vmatpush1.msra.mxu0 0.0
        %1221 = vmatprep.subr.mxu0 0.0
        %1222 = vmatpush1.msra.mxu0 0.0
        %1223 = vmatprep.subr.mxu0 0.0
        %1224 = vmatpush1.msra.mxu0 0.0
        %1225 = vmatprep.subr.mxu0 0.0
        %1226 = vmatpush1.msra.mxu0 0.0
        %1227 = vmatprep.subr.mxu0 0.0
        %1228 = vmatpush1.msra.mxu0 0.0
        %1229 = vmatprep.subr.mxu0 0.0
        %1230 = vmatpush1.msra.mxu0 0.0
        %1231 = vmatprep.subr.mxu0 0.0
        %1232 = vmatpush1.msra.mxu0 0.0
        %1233 = vmatprep.subr.mxu0 0.0
        %1234 = vmatpush1.msra.mxu0 0.0
        %1235 = vmatprep.subr.mxu0 0.0
        %1236 = vmatpush1.msra.mxu0 0.0
        %1237 = vmatprep.subr.mxu0 0.0
        %1238 = vmatpush1.msra.mxu0 0.0
        %1239 = vmatprep.subr.mxu0 0.0
        %1240 = vmatpush1.msra.mxu0 0.0
        %1241 = vmatprep.subr.mxu0 0.0
        %1242 = vmatpush1.msra.mxu0 0.0
        %1243 = vmatprep.mubr.f32.mxu0 0.0
        %1244 = vmatmul.mubr.f32.gmra.mrb[0].mxu0 %v1174
        %v1245 = vpop.f32.mrb[0].mxu0
        %v1246 = vadd.f32 0.0, %v1245
        %v1247 = vpop.f32.mrb[0].mxu0
        %1248 = vmatprep.mubr.f32.mxu0 0.0
        %1249 = vmatmul.mubr.f32.gmra.mrb[0].mxu0 %v1177
        %v1250 = vpop.f32.mrb[0].mxu0
        %v1251 = vadd.f32 0.0, %v1250
        %v1252 = vpop.f32.mrb[0].mxu0
        %1253 = vdwg.mxu0
        %v1254 = vsub.f32 %v1082, %v1246
        %v1255 = vsub.f32 %v1087, %v1251
        %v1256 = vadd.f32 %v1171, %v1254
        %v1257 = vadd.f32 %v1172, %v1255
        %1258 = vmatprep.subr.mxu0 0.0
        %1259 = vmatpush1.msra.mxu0 %v560
        %1260 = vmatprep.subr.mxu0 0.0
        %1261 = vmatpush1.msra.mxu0 %v561
        %1262 = vmatprep.subr.mxu0 0.0
        %1263 = vmatpush1.msra.mxu0 %v562
        %1264 = vmatprep.subr.mxu0 0.0
        %1265 = vmatpush1.msra.mxu0 %v563
        %1266 = vmatprep.subr.mxu0 0.0
        %1267 = vmatpush1.msra.mxu0 %v564
        %1268 = vmatprep.subr.mxu0 0.0
        %1269 = vmatpush1.msra.mxu0 %v565
        %1270 = vmatprep.subr.mxu0 0.0
        %1271 = vmatpush1.msra.mxu0 %v566
        %1272 = vmatprep.subr.mxu0 0.0
        %1273 = vmatpush1.msra.mxu0 %v567
        %1274 = vmatprep.subr.mxu0 0.0
        %1275 = vmatpush1.msra.mxu0 %v568
        %1276 = vmatprep.subr.mxu0 0.0
        %1277 = vmatpush1.msra.mxu0 %v569
        %1278 = vmatprep.subr.mxu0 0.0
        %1279 = vmatpush1.msra.mxu0 %v570
        %1280 = vmatprep.subr.mxu0 0.0
        %1281 = vmatpush1.msra.mxu0 %v571
        %1282 = vmatprep.subr.mxu0 0.0
        %1283 = vmatpush1.msra.mxu0 %v572
        %1284 = vmatprep.subr.mxu0 0.0
        %1285 = vmatpush1.msra.mxu0 %v573
        %1286 = vmatprep.subr.mxu0 0.0
        %1287 = vmatpush1.msra.mxu0 %v574
        %1288 = vmatprep.subr.mxu0 0.0
        %1289 = vmatpush1.msra.mxu0 %v575
        %1290 = vmatprep.subr.mxu0 0.0
        %1291 = vmatpush1.msra.mxu0 0.0
        %1292 = vmatprep.subr.mxu0 0.0
        %1293 = vmatpush1.msra.mxu0 0.0
        %1294 = vmatprep.subr.mxu0 0.0
        %1295 = vmatpush1.msra.mxu0 0.0
        %1296 = vmatprep.subr.mxu0 0.0
        %1297 = vmatpush1.msra.mxu0 0.0
        %1298 = vmatprep.subr.mxu0 0.0
        %1299 = vmatpush1.msra.mxu0 0.0
        %1300 = vmatprep.subr.mxu0 0.0
        %1301 = vmatpush1.msra.mxu0 0.0
        %1302 = vmatprep.subr.mxu0 0.0
        %1303 = vmatpush1.msra.mxu0 0.0
        %1304 = vmatprep.subr.mxu0 0.0
        %1305 = vmatpush1.msra.mxu0 0.0
        %1306 = vmatprep.subr.mxu0 0.0
        %1307 = vmatpush1.msra.mxu0 0.0
        %1308 = vmatprep.subr.mxu0 0.0
        %1309 = vmatpush1.msra.mxu0 0.0
        %1310 = vmatprep.subr.mxu0 0.0
        %1311 = vmatpush1.msra.mxu0 0.0
        %1312 = vmatprep.subr.mxu0 0.0
        %1313 = vmatpush1.msra.mxu0 0.0
        %1314 = vmatprep.subr.mxu0 0.0
        %1315 = vmatpush1.msra.mxu0 0.0
        %1316 = vmatprep.subr.mxu0 0.0
        %1317 = vmatpush1.msra.mxu0 0.0
        %1318 = vmatprep.subr.mxu0 0.0
        %1319 = vmatpush1.msra.mxu0 0.0
        %1320 = vmatprep.subr.mxu0 0.0
        %1321 = vmatpush1.msra.mxu0 0.0
        %1322 = vmatprep.mubr.f32.mxu0 0.0
        %1323 = vmatmul.mubr.f32.gmra.mrb[0].mxu0 %v1256
        %v1324 = vpop.f32.mrb[0].mxu0
        %v1325 = vadd.f32 0.0, %v1324
        %v1326 = vpop.f32.mrb[0].mxu0
        %1327 = vmatprep.mubr.f32.mxu0 0.0
        %1328 = vmatmul.mubr.f32.gmra.mrb[0].mxu0 %v1257
        %v1329 = vpop.f32.mrb[0].mxu0
        %v1330 = vadd.f32 0.0, %v1329
        %v1331 = vpop.f32.mrb[0].mxu0
        %1332 = vdwg.mxu0
        %1333 = vmatprep.subr.mxu0 0.0
        %1334 = vmatpush1.msra.mxu0 %v576
        %1335 = vmatprep.subr.mxu0 0.0
        %1336 = vmatpush1.msra.mxu0 %v577
        %1337 = vmatprep.subr.mxu0 0.0
        %1338 = vmatpush1.msra.mxu0 %v578
        %1339 = vmatprep.subr.mxu0 0.0
        %1340 = vmatpush1.msra.mxu0 %v579
        %1341 = vmatprep.subr.mxu0 0.0
        %1342 = vmatpush1.msra.mxu0 %v580
        %1343 = vmatprep.subr.mxu0 0.0
        %1344 = vmatpush1.msra.mxu0 %v581
        %1345 = vmatprep.subr.mxu0 0.0
        %1346 = vmatpush1.msra.mxu0 %v582
        %1347 = vmatprep.subr.mxu0 0.0
        %1348 = vmatpush1.msra.mxu0 %v583
        %1349 = vmatprep.subr.mxu0 0.0
        %1350 = vmatpush1.msra.mxu0 %v584
        %1351 = vmatprep.subr.mxu0 0.0
        %1352 = vmatpush1.msra.mxu0 %v585
        %1353 = vmatprep.subr.mxu0 0.0
        %1354 = vmatpush1.msra.mxu0 %v586
        %1355 = vmatprep.subr.mxu0 0.0
        %1356 = vmatpush1.msra.mxu0 %v587
        %1357 = vmatprep.subr.mxu0 0.0
        %1358 = vmatpush1.msra.mxu0 %v588
        %1359 = vmatprep.subr.mxu0 0.0
        %1360 = vmatpush1.msra.mxu0 %v589
        %1361 = vmatprep.subr.mxu0 0.0
        %1362 = vmatpush1.msra.mxu0 %v590
        %1363 = vmatprep.subr.mxu0 0.0
        %1364 = vmatpush1.msra.mxu0 %v591
        %1365 = vmatprep.subr.mxu0 0.0
        %1366 = vmatpush1.msra.mxu0 0.0
        %1367 = vmatprep.subr.mxu0 0.0
        %1368 = vmatpush1.msra.mxu0 0.0
        %1369 = vmatprep.subr.mxu0 0.0
        %1370 = vmatpush1.msra.mxu0 0.0
        %1371 = vmatprep.subr.mxu0 0.0
        %1372 = vmatpush1.msra.mxu0 0.0
        %1373 = vmatprep.subr.mxu0 0.0
        %1374 = vmatpush1.msra.mxu0 0.0
        %1375 = vmatprep.subr.mxu0 0.0
        %1376 = vmatpush1.msra.mxu0 0.0
        %1377 = vmatprep.subr.mxu0 0.0
        %1378 = vmatpush1.msra.mxu0 0.0
        %1379 = vmatprep.subr.mxu0 0.0
        %1380 = vmatpush1.msra.mxu0 0.0
        %1381 = vmatprep.subr.mxu0 0.0
        %1382 = vmatpush1.msra.mxu0 0.0
        %1383 = vmatprep.subr.mxu0 0.0
        %1384 = vmatpush1.msra.mxu0 0.0
        %1385 = vmatprep.subr.mxu0 0.0
        %1386 = vmatpush1.msra.mxu0 0.0
        %1387 = vmatprep.subr.mxu0 0.0
        %1388 = vmatpush1.msra.mxu0 0.0
        %1389 = vmatprep.subr.mxu0 0.0
        %1390 = vmatpush1.msra.mxu0 0.0
        %1391 = vmatprep.subr.mxu0 0.0
        %1392 = vmatpush1.msra.mxu0 0.0
        %1393 = vmatprep.subr.mxu0 0.0
        %1394 = vmatpush1.msra.mxu0 0.0
        %1395 = vmatprep.subr.mxu0 0.0
        %1396 = vmatpush1.msra.mxu0 0.0
        %1397 = vmatprep.mubr.f32.mxu0 0.0
        %1398 = vmatmul.mubr.f32.gmra.mrb[0].mxu0 %v1254
        %v1399 = vpop.f32.mrb[0].mxu0
        %v1400 = vadd.f32 0.0, %v1399
        %v1401 = vpop.f32.mrb[0].mxu0
        %1402 = vmatprep.mubr.f32.mxu0 0.0
        %1403 = vmatmul.mubr.f32.gmra.mrb[0].mxu0 %v1255
        %v1404 = vpop.f32.mrb[0].mxu0
        %v1405 = vadd.f32 0.0, %v1404
        %v1406 = vpop.f32.mrb[0].mxu0
        %1407 = vdwg.mxu0
        %v1408 = vsub.f32 %v1325, %v1400
        %v1409 = vsub.f32 %v1330, %v1405
        %v1410 = vmul.f32 %v1408, 0.00390625
        %v1411 = vmul.f32 %v1409, 0.00390625
        %1412 = vmatprep.subr.mxu0 0.0
        %1413 = vmatpush1.msra.mxu0 %v592
        %1414 = vmatprep.subr.mxu0 0.0
        %1415 = vmatpush1.msra.mxu0 %v593
        %1416 = vmatprep.subr.mxu0 0.0
        %1417 = vmatpush1.msra.mxu0 %v594
        %1418 = vmatprep.subr.mxu0 0.0
        %1419 = vmatpush1.msra.mxu0 %v595
        %1420 = vmatprep.subr.mxu0 0.0
        %1421 = vmatpush1.msra.mxu0 %v596
        %1422 = vmatprep.subr.mxu0 0.0
        %1423 = vmatpush1.msra.mxu0 %v597
        %1424 = vmatprep.subr.mxu0 0.0
        %1425 = vmatpush1.msra.mxu0 %v598
        %1426 = vmatprep.subr.mxu0 0.0
        %1427 = vmatpush1.msra.mxu0 %v599
        %1428 = vmatprep.subr.mxu0 0.0
        %1429 = vmatpush1.msra.mxu0 %v600
        %1430 = vmatprep.subr.mxu0 0.0
        %1431 = vmatpush1.msra.mxu0 %v601
        %1432 = vmatprep.subr.mxu0 0.0
        %1433 = vmatpush1.msra.mxu0 %v602
        %1434 = vmatprep.subr.mxu0 0.0
        %1435 = vmatpush1.msra.mxu0 %v603
        %1436 = vmatprep.subr.mxu0 0.0
        %1437 = vmatpush1.msra.mxu0 %v604
        %1438 = vmatprep.subr.mxu0 0.0
        %1439 = vmatpush1.msra.mxu0 %v605
        %1440 = vmatprep.subr.mxu0 0.0
        %1441 = vmatpush1.msra.mxu0 %v606
        %1442 = vmatprep.subr.mxu0 0.0
        %1443 = vmatpush1.msra.mxu0 %v607
        %1444 = vmatprep.subr.mxu0 0.0
        %1445 = vmatpush1.msra.mxu0 0.0
        %1446 = vmatprep.subr.mxu0 0.0
        %1447 = vmatpush1.msra.mxu0 0.0
        %1448 = vmatprep.subr.mxu0 0.0
        %1449 = vmatpush1.msra.mxu0 0.0
        %1450 = vmatprep.subr.mxu0 0.0
        %1451 = vmatpush1.msra.mxu0 0.0
        %1452 = vmatprep.subr.mxu0 0.0
        %1453 = vmatpush1.msra.mxu0 0.0
        %1454 = vmatprep.subr.mxu0 0.0
        %1455 = vmatpush1.msra.mxu0 0.0
        %1456 = vmatprep.subr.mxu0 0.0
        %1457 = vmatpush1.msra.mxu0 0.0
        %1458 = vmatprep.subr.mxu0 0.0
        %1459 = vmatpush1.msra.mxu0 0.0
        %1460 = vmatprep.subr.mxu0 0.0
        %1461 = vmatpush1.msra.mxu0 0.0
        %1462 = vmatprep.subr.mxu0 0.0
        %1463 = vmatpush1.msra.mxu0 0.0
        %1464 = vmatprep.subr.mxu0 0.0
        %1465 = vmatpush1.msra.mxu0 0.0
        %1466 = vmatprep.subr.mxu0 0.0
        %1467 = vmatpush1.msra.mxu0 0.0
        %1468 = vmatprep.subr.mxu0 0.0
        %1469 = vmatpush1.msra.mxu0 0.0
        %1470 = vmatprep.subr.mxu0 0.0
        %1471 = vmatpush1.msra.mxu0 0.0
        %1472 = vmatprep.subr.mxu0 0.0
        %1473 = vmatpush1.msra.mxu0 0.0
        %1474 = vmatprep.subr.mxu0 0.0
        %1475 = vmatpush1.msra.mxu0 0.0
        %1476 = vmatprep.mubr.f32.mxu0 0.0
        %1477 = vmatmul.mubr.f32.gmra.mrb[0].mxu0 %v1171
        %v1478 = vpop.f32.mrb[0].mxu0
        %v1479 = vadd.f32 0.0, %v1478
        %v1480 = vpop.f32.mrb[0].mxu0
        %1481 = vmatprep.mubr.f32.mxu0 0.0
        %1482 = vmatmul.mubr.f32.gmra.mrb[0].mxu0 %v1172
        %v1483 = vpop.f32.mrb[0].mxu0
        %v1484 = vadd.f32 0.0, %v1483
        %v1485 = vpop.f32.mrb[0].mxu0
        %1486 = vdwg.mxu0
        %v1487 = vsub.f32 %v1325, %v1479
        %v1488 = vsub.f32 %v1330, %v1484
        %v1489 = vmul.f32 %v1487, 0.00390625
        %v1490 = vmul.f32 %v1488, 0.00390625
        %1491 = vst [vmem:[%s540] sm:$0xff] %v1410
        %1492 = vst [vmem:[%s540 + $0x8] sm:$0xff] %v1411
        %s1493 = scalar_lea.vmem %s540, 16 [#allocation17]
        %1494 = vst [vmem:[%s1493] sm:$0xff] %v1489
        %1495 = vst [vmem:[%s1493 + $0x8] sm:$0xff] %v1490
        %v1496 = vmul.f32 %v1410, %v1410
        %v1497 = vmul.f32 %v1411, %v1411
        %v1498 = vmul.f32 %v1489, %v1489
        %v1499 = vmul.f32 %v1490, %v1490
        %v1500 = vadd.f32 %v1496, %v1498
        %v1501 = vadd.f32 %v1497, %v1499
        %v1502 = vrsqrt.pop %v1500
        %v1503 = vmul.f32 %v1500, %v1502
        %vm1504 = vcmp.eq.f32.partialorder %v1500, inf
        %v1505 = vsel %vm1504, %v1500, %v1503
        %vm1506 = vcmp.eq.f32.partialorder %v1500, 0.0
        %v1507 = vand.u32 %v1500, 2147483648
        %v1508 = vsel %vm1506, %v1507, %v1505
        %v1509 = vrsqrt.pop %v1501
        %v1510 = vmul.f32 %v1501, %v1509
        %vm1511 = vcmp.eq.f32.partialorder %v1501, inf
        %v1512 = vsel %vm1511, %v1501, %v1510
        %vm1513 = vcmp.eq.f32.partialorder %v1501, 0.0
        %v1514 = vand.u32 %v1501, 2147483648
        %v1515 = vsel %vm1513, %v1514, %v1512
        %1516 = vst [vmem:[%s547] sm:$0xff] %v1508
        %1517 = vst [vmem:[%s547 + $0x8] sm:$0xff] %v1515
        %s1518 = sand.u32 %s245, 1
        %s1519 = scalar_lea.sflag [#allocation4], %s1518
        %s1520 = sand.u32 %s245, 1
        %s1521 = smul.addr %s1520, 32
        %s1522 = scalar_lea.vmem [#allocation16], %s1521
        %s1523 = sand.u32 %s38, 1
        %s1524 = scalar_lea.sflag [#allocation18], %s1523
        %s1525 = sand.u32 %s271, 1
        %s1526 = smul.addr %s1525, 32
        %s1527 = scalar_lea.vmem [#allocation17], %s1526
        %s1528 = sand.u32 %s38, 1
        %s1529 = scalar_lea.sflag [#allocation18], %s1528
        %s1530 = sand.u32 %s297, 1
        %s1531 = smul.addr %s1530, 16
        %s1532 = scalar_lea.vmem [#allocation19], %s1531
        // Predicated region
        $region89: #{tpu_custom_call.1} parent=55 // pred_check
          %p1533 = pneg %p255
        $region90: #{tpu_custom_call.1} parent=55 // pred_check_branch
          %1535 = sbr.rel (%p1533) target = $region92
        $region91: #{tpu_custom_call.1} parent=55 // pred_region
          %s1537 = ssub.s32 512, 512
          %1538 = vsyncadd %s1519, %s1537
          %s1539 = smul.addr %s38, 128
          %s1540 = scalar_lea.hbm %s9, %s1539
          %s1541 = sshll.u32 %s1522, 4
          %s1542 = int_to_ptr.vmem [resolvable:$true] %s1541
          %1547 = dma.vmem_to_hbm [thread:$0]  %s1542, 512, %s1540, %s1519, 128, 256, 8
        $region92: #{tpu_custom_call.1} parent=55 // pred_fallthru
          _
        // Predicated region
        $region93: #{tpu_custom_call.1} parent=55 // pred_check
          %p1548 = pneg %p281
        $region94: #{tpu_custom_call.1} parent=55 // pred_check_branch
          %1550 = sbr.rel (%p1548) target = $region96
        $region95: #{tpu_custom_call.1} parent=55 // pred_region
          %s1552 = ssub.s32 512, 512
          %1553 = vsyncadd %s1524, %s1552
          %s1554 = smul.addr %s38, 128
          %s1555 = scalar_lea.hbm %s10, %s1554
          %s1556 = sshll.u32 %s1527, 4
          %s1557 = int_to_ptr.vmem [resolvable:$true] %s1556
          %1562 = dma.vmem_to_hbm [thread:$0]  %s1557, 512, %s1555, %s1524, 128, 256, 8
        $region96: #{tpu_custom_call.1} parent=55 // pred_fallthru
          _
        // Predicated region
        $region97: #{tpu_custom_call.1} parent=55 // pred_check
          %p1563 = pneg %p307
        $region98: #{tpu_custom_call.1} parent=55 // pred_check_branch
          %1565 = sbr.rel (%p1563) target = $region100
        $region99: #{tpu_custom_call.1} parent=55 // pred_region
          %s1567 = ssub.s32 256, 256
          %1568 = vsyncadd %s1529, %s1567
          %s1569 = smul.addr %s38, 128
          %s1570 = scalar_lea.hbm %s11, %s1569
          %s1571 = sshll.u32 %s1532, 4
          %s1572 = int_to_ptr.vmem [resolvable:$true] %s1571
          %1577 = dma.vmem_to_hbm [thread:$0]  %s1572, 256, %s1570, %s1529, 128, 256, 8
        $region100: #{tpu_custom_call.1} parent=55 // pred_fallthru
          _
      $region56: #{tpu_custom_call.1} parent=5 // pred_fallthru
        _
      %p1578 = scmp.le.s32.totalorder 2, %s33
      // Predicated region
      $region101: #{tpu_custom_call.1} parent=5 // pred_check
        %p1579 = pneg %p1578
      $region102: #{tpu_custom_call.1} parent=5 // pred_check_branch
        %1581 = sbr.rel (%p1579) target = $region104
      $region103: #{tpu_custom_call.1} parent=5 // pred_region
        %s1582 = ssub.s32 %s33, 2
        // Predicated region
        $region105: #{tpu_custom_call.1} parent=103 // pred_check
          %p1583 = pneg %p261
        $region106: #{tpu_custom_call.1} parent=103 // pred_check_branch
          %1585 = sbr.rel (%p1583) target = $region108
        $region107: #{tpu_custom_call.1} parent=103 // pred_region
          %s1586 = sand.u32 %s246, 1
          %s1587 = scalar_lea.sflag [#allocation4], %s1586
          %s1588 = sand.u32 %s246, 1
          %s1589 = smul.addr %s1588, 32
          %s1590 = scalar_lea.vmem [#allocation16], %s1589
          %1591 = dma.done %s1587, 512
        $region108: #{tpu_custom_call.1} parent=103 // pred_fallthru
          _
        // Predicated region
        $region109: #{tpu_custom_call.1} parent=103 // pred_check
          %p1592 = pneg %p287
        $region110: #{tpu_custom_call.1} parent=103 // pred_check_branch
          %1594 = sbr.rel (%p1592) target = $region112
        $region111: #{tpu_custom_call.1} parent=103 // pred_region
          %s1595 = sand.u32 %s39, 1
          %s1596 = scalar_lea.sflag [#allocation18], %s1595
          %s1597 = sand.u32 %s272, 1
          %s1598 = smul.addr %s1597, 32
          %s1599 = scalar_lea.vmem [#allocation17], %s1598
          %1600 = dma.done %s1596, 512
        $region112: #{tpu_custom_call.1} parent=103 // pred_fallthru
          _
        // Predicated region
        $region113: #{tpu_custom_call.1} parent=103 // pred_check
          %p1601 = pneg %p313
        $region114: #{tpu_custom_call.1} parent=103 // pred_check_branch
          %1603 = sbr.rel (%p1601) target = $region116
        $region115: #{tpu_custom_call.1} parent=103 // pred_region
          %s1604 = sand.u32 %s39, 1
          %s1605 = scalar_lea.sflag [#allocation18], %s1604
          %s1606 = sand.u32 %s298, 1
          %s1607 = smul.addr %s1606, 16
          %s1608 = scalar_lea.vmem [#allocation19], %s1607
          %1609 = dma.done %s1605, 256
        $region116: #{tpu_custom_call.1} parent=103 // pred_fallthru
          _
      $region104: #{tpu_custom_call.1} parent=5 // pred_fallthru
        _
    $region6: #{tpu_custom_call.1} parent=1 // loop_footer
      %s37 = sadd.s32 1, %s33
    $region7: #{tpu_custom_call.1} parent=1 // loop_footer_branch
      %32 = sbr.rel target = $region3
    $region8: #{tpu_custom_call.1} parent=1 // loop_exit
      _
    %1610 = vsyncpa [#allocation3], 1
    %s1611 = scalar_lea.sflag [#allocation3], 1
    %1612 = vsyncpa %s1611, 1
    %1613 = vsyncpa [#allocation6], 1
    %s1614 = scalar_lea.sflag [#allocation6], 1
    %1615 = vsyncpa %s1614, 1
    %1616 = vsyncpa [#allocation9], 1
    %1617 = vsyncpa [#allocation12], 1
    %1618 = vsyncpa [#allocation15], 1
    %1619 = vsyncpa [#allocation4], 1
    %s1620 = scalar_lea.sflag [#allocation4], 1
    %1621 = vsyncpa %s1620, 1
    %1622 = vsyncpa [#allocation18], 1
    %s1623 = scalar_lea.sflag [#allocation18], 1
    %1624 = vsyncpa %s1623, 1

</llo_original>
